<compile_context>
chip_gen: v7x
topology: tpu7x:2x2x1
jax: 0.10.0
libtpu: 0.0.40
codegen_flags: <defaults>
</compile_context>

<pallas_src>
import functools
import math

import jax
import jax.numpy as jnp
from jax.experimental import pallas as pl
from jax.experimental.pallas import tpu as pltpu

N_HEAD = 4
N_EMBED = 32
D_HEAD = N_EMBED // N_HEAD
EPS = 1e-5        # PyTorch nn.LayerNorm default
LANE = 128        # TPU lane-tile width


def _layernorm(x, gamma, beta):
    # biased variance over last axis, same as torch.nn.LayerNorm
    mean = jnp.mean(x, axis=-1, keepdims=True)
    var = jnp.mean((x - mean) ** 2, axis=-1, keepdims=True)
    return (x - mean) * jax.lax.rsqrt(var + EPS) * gamma + beta


def clip_layer_kernel(x_ref, wslab_ref, w2_ref, bslab_ref, o_ref, *, batch, seq):
    # x_ref: (B*S, E) flattened activations, fully VMEM-resident.
    N, E = x_ref.shape
    B, S = batch, seq
    D = E // N_HEAD
    assert N == B * S

    x = x_ref[...].astype(jnp.float32)                      # (N, E)

    # ---- unpack parameters: every slice starts on a 128-lane boundary -------
    # (static Ref slices -> plain aligned VMEM loads, no lane rotations)
    w_q = wslab_ref[:, 0 * LANE:0 * LANE + E]                # (E, E), scale folded
    w_k = wslab_ref[:, 1 * LANE:1 * LANE + E]                # (E, E)
    w_v = wslab_ref[:, 2 * LANE:2 * LANE + E]                # (E, E)
    w1  = wslab_ref[:, 4 * LANE:4 * LANE + 4 * E]            # (E, 4E)
    w2  = w2_ref[...]                                        # (4E, E)

    ln1_g = bslab_ref[:, 0 * LANE:0 * LANE + E]
    ln1_b = bslab_ref[:, 1 * LANE:1 * LANE + E]
    b_q   = bslab_ref[:, 2 * LANE:2 * LANE + E]              # scale folded
    b_k   = bslab_ref[:, 3 * LANE:3 * LANE + E]
    b_v   = bslab_ref[:, 4 * LANE:4 * LANE + E]
    b_out = bslab_ref[:, 5 * LANE:5 * LANE + E]
    ln2_g = bslab_ref[:, 6 * LANE:6 * LANE + E]
    ln2_b = bslab_ref[:, 7 * LANE:7 * LANE + E]
    b1    = bslab_ref[:, 8 * LANE:8 * LANE + 4 * E]
    b2    = bslab_ref[:, 9 * LANE:9 * LANE + E]

    # ---- block 1: LN -> causal self-attention -> residual -------------------
    residue = x
    h = _layernorm(x, ln1_g, ln1_b)

    # Separate Q/K/V projections: each result lands at lane 0, so no lane-split
    # of a (N, 3E) value.  The (N,E)->(B,S,E) reshape is a layout no-op only
    # because S is a multiple of 8 (sublane-tile boundary).
    q = (jnp.dot(h, w_q, preferred_element_type=jnp.float32) + b_q).reshape(B, S, E)
    k = (jnp.dot(h, w_k, preferred_element_type=jnp.float32) + b_k).reshape(B, S, E)
    v = (jnp.dot(h, w_v, preferred_element_type=jnp.float32) + b_v).reshape(B, S, E)

    # Causal additive mask, hoisted out of the head loop.  Finite negative so a
    # fully-masked row could never produce NaN.
    rows = jax.lax.broadcasted_iota(jnp.int32, (1, S, S), 1)
    cols = jax.lax.broadcasted_iota(jnp.int32, (1, S, S), 2)
    mask_add = jnp.where(cols > rows, jnp.float32(-1e30), jnp.float32(0.0))

    # Per-head attention with partial output projection accumulated into `attn`
    # (no 4-way lane concatenation, no separate (N,E)@(E,E) matmul).
    attn = jnp.zeros((N, E), jnp.float32)
    for hd in range(N_HEAD):                                 # 4 static iterations
        sl = slice(hd * D, (hd + 1) * D)
        qh, kh, vh = q[..., sl], k[..., sl], v[..., sl]      # (B, S, D)
        scores = jnp.einsum('bqd,bkd->bqk', qh, kh,
                            preferred_element_type=jnp.float32)   # (B, S, S)
        scores = scores + mask_add
        scores = scores - jnp.max(scores, axis=-1, keepdims=True)  # kept: overflow safety
        p = jnp.exp(scores)
        p = p * pl.reciprocal(jnp.sum(p, axis=-1, keepdims=True), approx=True)
        oh = jnp.einsum('bqk,bkd->bqd', p, vh,
                        preferred_element_type=jnp.float32)  # (B, S, D)
        # w_out row block for this head: sublane-tile-aligned Ref slice.
        w_out_h = wslab_ref[hd * D:(hd + 1) * D, 3 * LANE:3 * LANE + E]   # (D, E)
        attn = attn + jnp.dot(oh.reshape(N, D), w_out_h,
                              preferred_element_type=jnp.float32)
    x2 = attn + b_out + residue

    # ---- block 2: LN -> Linear -> QuickGELU -> Linear -> residual -----------
    residue2 = x2
    h2 = _layernorm(x2, ln2_g, ln2_b)
    h2 = jnp.dot(h2, w1, preferred_element_type=jnp.float32) + b1    # (N, 4E) lane-dense
    h2 = h2 * jax.nn.sigmoid(1.702 * h2)                             # QuickGELU
    h2 = jnp.dot(h2, w2, preferred_element_type=jnp.float32) + b2

    o_ref[...] = (h2 + residue2).astype(o_ref.dtype)                 # one contiguous store


def pack_clip_params(params):
    """One-time, weight-load-time packing.  NOT part of the per-call path.

    Layout (every segment starts at a multiple of 128 lanes):
      wslab (E, 5*128): [w_q*s | w_k | w_v | w_out | w1]
      bslab (1, 10*128): [ln1_g | ln1_b | b_q*s | b_k | b_v | b_out |
                          ln2_g | ln2_b | b1 | b2]
      w2 passed through unchanged ((4E, E): 128 sublanes, lane-dense).
    """
    (ln1_g, ln1_b, w_in, b_in, w_out, b_out,
     ln2_g, ln2_b, w1, b1, w2, b2) = params
    E = N_EMBED
    scale = 1.0 / math.sqrt(D_HEAD)

    def seg(a):
        # pad last dim up to the next multiple of 128 lanes
        width = -(-a.shape[-1] // LANE) * LANE
        return jnp.pad(a, ((0, 0), (0, width - a.shape[-1])))

    w_q = w_in[:, 0 * E:1 * E] * scale      # fold 1/sqrt(D_HEAD) into Q
    w_k = w_in[:, 1 * E:2 * E]
    w_v = w_in[:, 2 * E:3 * E]
    b_q = b_in[:, 0 * E:1 * E] * scale
    b_k = b_in[:, 1 * E:2 * E]
    b_v = b_in[:, 2 * E:3 * E]

    wslab = jnp.concatenate(
        [seg(w_q), seg(w_k), seg(w_v), seg(w_out), seg(w1)], axis=1)       # (E, 640)
    bslab = jnp.concatenate(
        [seg(ln1_g), seg(ln1_b), seg(b_q), seg(b_k), seg(b_v), seg(b_out),
         seg(ln2_g), seg(ln2_b), seg(b1), seg(b2)], axis=1)                # (1, 1280)

    return wslab, w2, bslab


def clip_layer(x, packed_params):
    B, S, E = x.shape
    assert E == N_EMBED
    wslab, w2, bslab = packed_params

    x2d = x.reshape(B * S, E)
    N = B * S

    kernel = functools.partial(clip_layer_kernel, batch=B, seq=S)
    vmem_spec = pl.BlockSpec(memory_space=pltpu.MemorySpace.VMEM)

    # Advisory cost estimate so the XLA scheduler can overlap this small
    # custom call with neighbouring ops.
    flops = 2 * N * E * E * (3 + 1 + 4 + 4) + 4 * B * N_HEAD * S * S * D_HEAD
    transcendentals = B * N_HEAD * S * S + N * 4 * E + 2 * N + B * N_HEAD * S
    bytes_accessed = 4 * (x2d.size + wslab.size + w2.size + bslab.size + N * E)
    cost = pl.CostEstimate(flops=int(flops),
                           transcendentals=int(transcendentals),
                           bytes_accessed=int(bytes_accessed))

    out = pl.pallas_call(
        kernel,
        out_shape=jax.ShapeDtypeStruct((N, E), x.dtype),
        in_specs=[vmem_spec, vmem_spec, vmem_spec, vmem_spec],
        out_specs=vmem_spec,
        cost_estimate=cost,
    )(x2d, wslab, w2, bslab)

    return out.reshape(B, S, E)


def reference(x, params):
    (ln1_g, ln1_b, w_in, b_in, w_out, b_out,
     ln2_g, ln2_b, w1, b1, w2, b2) = params
    B, S, E = x.shape

    def ln(v, g, b):
        m = jnp.mean(v, axis=-1, keepdims=True)
        var = jnp.mean((v - m) ** 2, axis=-1, keepdims=True)
        return (v - m) / jnp.sqrt(var + EPS) * g[0] + b[0]

    residue = x
    h = ln(x, ln1_g, ln1_b)
    qkv = h @ w_in + b_in[0]
    q, k, v = jnp.split(qkv, 3, axis=-1)
    q = q.reshape(B, S, N_HEAD, D_HEAD).transpose(0, 2, 1, 3)
    k = k.reshape(B, S, N_HEAD, D_HEAD).transpose(0, 2, 1, 3)
    v = v.reshape(B, S, N_HEAD, D_HEAD).transpose(0, 2, 1, 3)
    w = jnp.einsum('bhqd,bhkd->bhqk', q, k) / math.sqrt(D_HEAD)
    mask = jnp.triu(jnp.ones((S, S), bool), 1)
    w = jnp.where(mask, -jnp.inf, w)
    w = jax.nn.softmax(w, axis=-1)
    o = jnp.einsum('bhqk,bhkd->bhqd', w, v).transpose(0, 2, 1, 3).reshape(B, S, E)
    o = o @ w_out + b_out[0]
    x = o + residue
    residue = x
    h = ln(x, ln2_g, ln2_b)
    h = h @ w1 + b1[0]
    h = h * jax.nn.sigmoid(1.702 * h)
    h = h @ w2 + b2[0]
    return h + residue


if __name__ == "__main__":
    B, S, E = 2, 8, N_EMBED
    key = jax.random.PRNGKey(0)
    keys = jax.random.split(key, 8)

    x = jax.random.normal(keys[0], (B, S, E), jnp.float32)

    # deterministic synthetic parameters (1-D params kept as (1, N) for TPU 2-D refs)
    ln1_g = jnp.ones((1, E), jnp.float32)
    ln1_b = jnp.zeros((1, E), jnp.float32)
    ln2_g = jnp.ones((1, E), jnp.float32)
    ln2_b = jnp.zeros((1, E), jnp.float32)
    s = 0.05
    w_in = s * jax.random.normal(keys[1], (E, 3 * E), jnp.float32)
    b_in = s * jax.random.normal(keys[2], (1, 3 * E), jnp.float32)
    w_out = s * jax.random.normal(keys[3], (E, E), jnp.float32)
    b_out = s * jax.random.normal(keys[4], (1, E), jnp.float32)
    w1 = s * jax.random.normal(keys[5], (E, 4 * E), jnp.float32)
    b1 = s * jax.random.normal(keys[6], (1, 4 * E), jnp.float32)
    w2 = s * jax.random.normal(keys[7], (4 * E, E), jnp.float32)
    b2 = jnp.zeros((1, E), jnp.float32)

    params = (ln1_g, ln1_b, w_in, b_in, w_out, b_out,
              ln2_g, ln2_b, w1, b1, w2, b2)

    # One-time packing (weight-load time), then the jitted forward.
    packed = jax.tree_util.tree_map(jax.block_until_ready, pack_clip_params(params))
    clip_fwd = jax.jit(clip_layer)

    out = clip_fwd(x, packed)
    out = jax.block_until_ready(out)

    ref = reference(x, params)
    assert out.shape == (B, S, E)
    # tolerance 1e-3: approximate EUP reciprocal in the softmax adds ~1e-4-level
    # error relative to the exact-division XLA reference.
    assert jnp.allclose(out, ref, atol=1e-3, rtol=1e-3), \
        f"max err {jnp.max(jnp.abs(out - ref))}"

    print("KERNEL_OK")
</pallas_src>

<mosaic_0001>
module attributes {stable_mosaic.version = 11 : i64} {
  func.func @clip_layer_kernel(%arg0: memref<16x32xf32, #tpu.memory_space<vmem>>, %arg1: memref<32x640xf32, #tpu.memory_space<vmem>>, %arg2: memref<128x32xf32, #tpu.memory_space<vmem>>, %arg3: memref<1x1280xf32, #tpu.memory_space<vmem>>, %arg4: memref<16x32xf32, #tpu.memory_space<vmem>>) attributes {dimension_semantics = [], scalar_prefetch = 0 : i64, scratch_operands = 0 : i64, tpu.core_type = #tpu.core_type<tc>} {
    %c0 = arith.constant 0 : index
    %c0_0 = arith.constant 0 : index
    %0 = vector.load %arg0[%c0, %c0_0] : memref<16x32xf32, #tpu.memory_space<vmem>>, vector<16x32xf32>
    %c0_1 = arith.constant 0 : index
    %c0_2 = arith.constant 0 : index
    %1 = vector.load %arg1[%c0_1, %c0_2] : memref<32x640xf32, #tpu.memory_space<vmem>>, vector<32x32xf32>
    %c0_3 = arith.constant 0 : index
    %c128 = arith.constant 128 : index
    %2 = vector.load %arg1[%c0_3, %c128] : memref<32x640xf32, #tpu.memory_space<vmem>>, vector<32x32xf32>
    %c0_4 = arith.constant 0 : index
    %c256 = arith.constant 256 : index
    %3 = vector.load %arg1[%c0_4, %c256] : memref<32x640xf32, #tpu.memory_space<vmem>>, vector<32x32xf32>
    %c0_5 = arith.constant 0 : index
    %c512 = arith.constant 512 : index
    %4 = vector.load %arg1[%c0_5, %c512] : memref<32x640xf32, #tpu.memory_space<vmem>>, vector<32x128xf32>
    %c0_6 = arith.constant 0 : index
    %c0_7 = arith.constant 0 : index
    %5 = vector.load %arg2[%c0_6, %c0_7] : memref<128x32xf32, #tpu.memory_space<vmem>>, vector<128x32xf32>
    %c0_8 = arith.constant 0 : index
    %c0_9 = arith.constant 0 : index
    %6 = vector.load %arg3[%c0_8, %c0_9] : memref<1x1280xf32, #tpu.memory_space<vmem>>, vector<1x32xf32>
    %c0_10 = arith.constant 0 : index
    %c128_11 = arith.constant 128 : index
    %7 = vector.load %arg3[%c0_10, %c128_11] : memref<1x1280xf32, #tpu.memory_space<vmem>>, vector<1x32xf32>
    %c0_12 = arith.constant 0 : index
    %c256_13 = arith.constant 256 : index
    %8 = vector.load %arg3[%c0_12, %c256_13] : memref<1x1280xf32, #tpu.memory_space<vmem>>, vector<1x32xf32>
    %c0_14 = arith.constant 0 : index
    %c384 = arith.constant 384 : index
    %9 = vector.load %arg3[%c0_14, %c384] : memref<1x1280xf32, #tpu.memory_space<vmem>>, vector<1x32xf32>
    %c0_15 = arith.constant 0 : index
    %c512_16 = arith.constant 512 : index
    %10 = vector.load %arg3[%c0_15, %c512_16] : memref<1x1280xf32, #tpu.memory_space<vmem>>, vector<1x32xf32>
    %c0_17 = arith.constant 0 : index
    %c640 = arith.constant 640 : index
    %11 = vector.load %arg3[%c0_17, %c640] : memref<1x1280xf32, #tpu.memory_space<vmem>>, vector<1x32xf32>
    %c0_18 = arith.constant 0 : index
    %c768 = arith.constant 768 : index
    %12 = vector.load %arg3[%c0_18, %c768] : memref<1x1280xf32, #tpu.memory_space<vmem>>, vector<1x32xf32>
    %c0_19 = arith.constant 0 : index
    %c896 = arith.constant 896 : index
    %13 = vector.load %arg3[%c0_19, %c896] : memref<1x1280xf32, #tpu.memory_space<vmem>>, vector<1x32xf32>
    %c0_20 = arith.constant 0 : index
    %c1024 = arith.constant 1024 : index
    %14 = vector.load %arg3[%c0_20, %c1024] : memref<1x1280xf32, #tpu.memory_space<vmem>>, vector<1x128xf32>
    %c0_21 = arith.constant 0 : index
    %c1152 = arith.constant 1152 : index
    %15 = vector.load %arg3[%c0_21, %c1152] : memref<1x1280xf32, #tpu.memory_space<vmem>>, vector<1x32xf32>
    %cst = arith.constant dense<0.000000e+00> : vector<16xf32>
    %16 = vector.multi_reduction <add>, %0, %cst [1] : vector<16x32xf32> to vector<16xf32>
    %17 = vector.shape_cast %16 : vector<16xf32> to vector<16x1xf32>
    %cst_22 = arith.constant 3.200000e+01 : f32
    %18 = vector.broadcast %cst_22 : f32 to vector<16x1xf32>
    %19 = arith.divf %17, %18 : vector<16x1xf32>
    %20 = vector.broadcast %19 : vector<16x1xf32> to vector<16x32xf32>
    %21 = arith.subf %0, %20 : vector<16x32xf32>
    %22 = arith.mulf %21, %21 : vector<16x32xf32>
    %cst_23 = arith.constant dense<0.000000e+00> : vector<16xf32>
    %23 = vector.multi_reduction <add>, %22, %cst_23 [1] : vector<16x32xf32> to vector<16xf32>
    %24 = vector.shape_cast %23 : vector<16xf32> to vector<16x1xf32>
    %cst_24 = arith.constant 3.200000e+01 : f32
    %25 = vector.broadcast %cst_24 : f32 to vector<16x1xf32>
    %26 = arith.divf %24, %25 : vector<16x1xf32>
    %27 = vector.broadcast %19 : vector<16x1xf32> to vector<16x32xf32>
    %28 = arith.subf %0, %27 : vector<16x32xf32>
    %cst_25 = arith.constant 9.99999974E-6 : f32
    %29 = vector.broadcast %cst_25 : f32 to vector<16x1xf32>
    %30 = arith.addf %26, %29 : vector<16x1xf32>
    %31 = math.rsqrt %30 : vector<16x1xf32>
    %32 = vector.broadcast %31 : vector<16x1xf32> to vector<16x32xf32>
    %33 = arith.mulf %28, %32 : vector<16x32xf32>
    %34 = vector.broadcast %6 : vector<1x32xf32> to vector<16x32xf32>
    %35 = arith.mulf %33, %34 : vector<16x32xf32>
    %36 = vector.broadcast %7 : vector<1x32xf32> to vector<16x32xf32>
    %37 = arith.addf %35, %36 : vector<16x32xf32>
    %cst_26 = arith.constant dense<0.000000e+00> : vector<16x32xf32>
    %38 = tpu.matmul %37, %1, %cst_26 {dimension_numbers = #tpu.dot_dimension_numbers<[1], [0], [0], [1], [0, 0, 1, 1], [], []>} : vector<16x32xf32>, vector<32x32xf32>, vector<16x32xf32> -> vector<16x32xf32>
    %39 = vector.broadcast %8 : vector<1x32xf32> to vector<16x32xf32>
    %40 = arith.addf %38, %39 : vector<16x32xf32>
    %41 = vector.shape_cast %40 : vector<16x32xf32> to vector<2x8x32xf32>
    %cst_27 = arith.constant dense<0.000000e+00> : vector<16x32xf32>
    %42 = tpu.matmul %37, %2, %cst_27 {dimension_numbers = #tpu.dot_dimension_numbers<[1], [0], [0], [1], [0, 0, 1, 1], [], []>} : vector<16x32xf32>, vector<32x32xf32>, vector<16x32xf32> -> vector<16x32xf32>
    %43 = vector.broadcast %9 : vector<1x32xf32> to vector<16x32xf32>
    %44 = arith.addf %42, %43 : vector<16x32xf32>
    %45 = vector.shape_cast %44 : vector<16x32xf32> to vector<2x8x32xf32>
    %cst_28 = arith.constant dense<0.000000e+00> : vector<16x32xf32>
    %46 = tpu.matmul %37, %3, %cst_28 {dimension_numbers = #tpu.dot_dimension_numbers<[1], [0], [0], [1], [0, 0, 1, 1], [], []>} : vector<16x32xf32>, vector<32x32xf32>, vector<16x32xf32> -> vector<16x32xf32>
    %47 = vector.broadcast %10 : vector<1x32xf32> to vector<16x32xf32>
    %48 = arith.addf %46, %47 : vector<16x32xf32>
    %49 = vector.shape_cast %48 : vector<16x32xf32> to vector<2x8x32xf32>
    %50 = tpu.iota {dimensions = array<i32: 1>} : vector<1x8x8xi32>
    %51 = tpu.iota {dimensions = array<i32: 2>} : vector<1x8x8xi32>
    %52 = arith.cmpi sgt, %51, %50 : vector<1x8x8xi32>
    %cst_29 = arith.constant -1.000000e+30 : f32
    %cst_30 = arith.constant 0.000000e+00 : f32
    %53 = vector.broadcast %cst_29 : f32 to vector<1x8x8xf32>
    %54 = vector.broadcast %cst_30 : f32 to vector<1x8x8xf32>
    %55 = arith.select %52, %53, %54 : vector<1x8x8xi1>, vector<1x8x8xf32>
    %cst_31 = arith.constant 0.000000e+00 : f32
    %56 = vector.broadcast %cst_31 : f32 to vector<16x32xf32>
    %57 = vector.extract_strided_slice %41 {offsets = [0, 0, 0], sizes = [2, 8, 8], strides = [1, 1, 1]} : vector<2x8x32xf32> to vector<2x8x8xf32>
    %58 = vector.extract_strided_slice %45 {offsets = [0, 0, 0], sizes = [2, 8, 8], strides = [1, 1, 1]} : vector<2x8x32xf32> to vector<2x8x8xf32>
    %59 = vector.extract_strided_slice %49 {offsets = [0, 0, 0], sizes = [2, 8, 8], strides = [1, 1, 1]} : vector<2x8x32xf32> to vector<2x8x8xf32>
    "tpu.trace_start"() <{level = 10 : i32, message = "bqd,bkd->bqk"}> : () -> ()
    %cst_32 = arith.constant dense<0.000000e+00> : vector<2x8x8xf32>
    %60 = tpu.matmul %57, %58, %cst_32 {dimension_numbers = #tpu.dot_dimension_numbers<[2], [2], [1], [1], [0, 0, 0, 1, 1, 1], [0], [0]>} : vector<2x8x8xf32>, vector<2x8x8xf32>, vector<2x8x8xf32> -> vector<2x8x8xf32>
    "tpu.trace_stop"() : () -> ()
    %61 = vector.broadcast %55 : vector<1x8x8xf32> to vector<2x8x8xf32>
    %62 = arith.addf %60, %61 : vector<2x8x8xf32>
    %cst_33 = arith.constant dense<0xFF800000> : vector<2x8xf32>
    %63 = vector.multi_reduction <maximumf>, %62, %cst_33 [2] : vector<2x8x8xf32> to vector<2x8xf32>
    %64 = vector.shape_cast %63 : vector<2x8xf32> to vector<2x8x1xf32>
    %65 = vector.broadcast %64 : vector<2x8x1xf32> to vector<2x8x8xf32>
    %66 = arith.subf %62, %65 : vector<2x8x8xf32>
    %67 = math.exp %66 : vector<2x8x8xf32>
    %cst_34 = arith.constant dense<0.000000e+00> : vector<2x8xf32>
    %68 = vector.multi_reduction <add>, %67, %cst_34 [2] : vector<2x8x8xf32> to vector<2x8xf32>
    %69 = vector.shape_cast %68 : vector<2x8xf32> to vector<2x8x1xf32>
    %70 = tpu.reciprocal %69 {approx = true} : vector<2x8x1xf32> -> vector<2x8x1xf32>
    %71 = vector.broadcast %70 : vector<2x8x1xf32> to vector<2x8x8xf32>
    %72 = arith.mulf %67, %71 : vector<2x8x8xf32>
    "tpu.trace_start"() <{level = 10 : i32, message = "bqk,bkd->bqd"}> : () -> ()
    %cst_35 = arith.constant dense<0.000000e+00> : vector<2x8x8xf32>
    %73 = tpu.matmul %72, %59, %cst_35 {dimension_numbers = #tpu.dot_dimension_numbers<[2], [1], [1], [2], [0, 0, 0, 1, 1, 2], [0], [0]>} : vector<2x8x8xf32>, vector<2x8x8xf32>, vector<2x8x8xf32> -> vector<2x8x8xf32>
    "tpu.trace_stop"() : () -> ()
    %c0_36 = arith.constant 0 : index
    %c384_37 = arith.constant 384 : index
    %74 = vector.load %arg1[%c0_36, %c384_37] : memref<32x640xf32, #tpu.memory_space<vmem>>, vector<8x32xf32>
    %75 = vector.shape_cast %73 : vector<2x8x8xf32> to vector<16x8xf32>
    %cst_38 = arith.constant dense<0.000000e+00> : vector<16x32xf32>
    %76 = tpu.matmul %75, %74, %cst_38 {dimension_numbers = #tpu.dot_dimension_numbers<[1], [0], [0], [1], [0, 0, 1, 1], [], []>} : vector<16x8xf32>, vector<8x32xf32>, vector<16x32xf32> -> vector<16x32xf32>
    %77 = arith.addf %56, %76 : vector<16x32xf32>
    %78 = vector.extract_strided_slice %41 {offsets = [0, 0, 8], sizes = [2, 8, 8], strides = [1, 1, 1]} : vector<2x8x32xf32> to vector<2x8x8xf32>
    %79 = vector.extract_strided_slice %45 {offsets = [0, 0, 8], sizes = [2, 8, 8], strides = [1, 1, 1]} : vector<2x8x32xf32> to vector<2x8x8xf32>
    %80 = vector.extract_strided_slice %49 {offsets = [0, 0, 8], sizes = [2, 8, 8], strides = [1, 1, 1]} : vector<2x8x32xf32> to vector<2x8x8xf32>
    "tpu.trace_start"() <{level = 10 : i32, message = "bqd,bkd->bqk"}> : () -> ()
    %cst_39 = arith.constant dense<0.000000e+00> : vector<2x8x8xf32>
    %81 = tpu.matmul %78, %79, %cst_39 {dimension_numbers = #tpu.dot_dimension_numbers<[2], [2], [1], [1], [0, 0, 0, 1, 1, 1], [0], [0]>} : vector<2x8x8xf32>, vector<2x8x8xf32>, vector<2x8x8xf32> -> vector<2x8x8xf32>
    "tpu.trace_stop"() : () -> ()
    %82 = vector.broadcast %55 : vector<1x8x8xf32> to vector<2x8x8xf32>
    %83 = arith.addf %81, %82 : vector<2x8x8xf32>
    %cst_40 = arith.constant dense<0xFF800000> : vector<2x8xf32>
    %84 = vector.multi_reduction <maximumf>, %83, %cst_40 [2] : vector<2x8x8xf32> to vector<2x8xf32>
    %85 = vector.shape_cast %84 : vector<2x8xf32> to vector<2x8x1xf32>
    %86 = vector.broadcast %85 : vector<2x8x1xf32> to vector<2x8x8xf32>
    %87 = arith.subf %83, %86 : vector<2x8x8xf32>
    %88 = math.exp %87 : vector<2x8x8xf32>
    %cst_41 = arith.constant dense<0.000000e+00> : vector<2x8xf32>
    %89 = vector.multi_reduction <add>, %88, %cst_41 [2] : vector<2x8x8xf32> to vector<2x8xf32>
    %90 = vector.shape_cast %89 : vector<2x8xf32> to vector<2x8x1xf32>
    %91 = tpu.reciprocal %90 {approx = true} : vector<2x8x1xf32> -> vector<2x8x1xf32>
    %92 = vector.broadcast %91 : vector<2x8x1xf32> to vector<2x8x8xf32>
    %93 = arith.mulf %88, %92 : vector<2x8x8xf32>
    "tpu.trace_start"() <{level = 10 : i32, message = "bqk,bkd->bqd"}> : () -> ()
    %cst_42 = arith.constant dense<0.000000e+00> : vector<2x8x8xf32>
    %94 = tpu.matmul %93, %80, %cst_42 {dimension_numbers = #tpu.dot_dimension_numbers<[2], [1], [1], [2], [0, 0, 0, 1, 1, 2], [0], [0]>} : vector<2x8x8xf32>, vector<2x8x8xf32>, vector<2x8x8xf32> -> vector<2x8x8xf32>
    "tpu.trace_stop"() : () -> ()
    %c8 = arith.constant 8 : index
    %c384_43 = arith.constant 384 : index
    %95 = vector.load %arg1[%c8, %c384_43] : memref<32x640xf32, #tpu.memory_space<vmem>>, vector<8x32xf32>
    %96 = vector.shape_cast %94 : vector<2x8x8xf32> to vector<16x8xf32>
    %cst_44 = arith.constant dense<0.000000e+00> : vector<16x32xf32>
    %97 = tpu.matmul %96, %95, %cst_44 {dimension_numbers = #tpu.dot_dimension_numbers<[1], [0], [0], [1], [0, 0, 1, 1], [], []>} : vector<16x8xf32>, vector<8x32xf32>, vector<16x32xf32> -> vector<16x32xf32>
    %98 = arith.addf %77, %97 : vector<16x32xf32>
    %99 = vector.extract_strided_slice %41 {offsets = [0, 0, 16], sizes = [2, 8, 8], strides = [1, 1, 1]} : vector<2x8x32xf32> to vector<2x8x8xf32>
    %100 = vector.extract_strided_slice %45 {offsets = [0, 0, 16], sizes = [2, 8, 8], strides = [1, 1, 1]} : vector<2x8x32xf32> to vector<2x8x8xf32>
    %101 = vector.extract_strided_slice %49 {offsets = [0, 0, 16], sizes = [2, 8, 8], strides = [1, 1, 1]} : vector<2x8x32xf32> to vector<2x8x8xf32>
    "tpu.trace_start"() <{level = 10 : i32, message = "bqd,bkd->bqk"}> : () -> ()
    %cst_45 = arith.constant dense<0.000000e+00> : vector<2x8x8xf32>
    %102 = tpu.matmul %99, %100, %cst_45 {dimension_numbers = #tpu.dot_dimension_numbers<[2], [2], [1], [1], [0, 0, 0, 1, 1, 1], [0], [0]>} : vector<2x8x8xf32>, vector<2x8x8xf32>, vector<2x8x8xf32> -> vector<2x8x8xf32>
    "tpu.trace_stop"() : () -> ()
    %103 = vector.broadcast %55 : vector<1x8x8xf32> to vector<2x8x8xf32>
    %104 = arith.addf %102, %103 : vector<2x8x8xf32>
    %cst_46 = arith.constant dense<0xFF800000> : vector<2x8xf32>
    %105 = vector.multi_reduction <maximumf>, %104, %cst_46 [2] : vector<2x8x8xf32> to vector<2x8xf32>
    %106 = vector.shape_cast %105 : vector<2x8xf32> to vector<2x8x1xf32>
    %107 = vector.broadcast %106 : vector<2x8x1xf32> to vector<2x8x8xf32>
    %108 = arith.subf %104, %107 : vector<2x8x8xf32>
    %109 = math.exp %108 : vector<2x8x8xf32>
    %cst_47 = arith.constant dense<0.000000e+00> : vector<2x8xf32>
    %110 = vector.multi_reduction <add>, %109, %cst_47 [2] : vector<2x8x8xf32> to vector<2x8xf32>
    %111 = vector.shape_cast %110 : vector<2x8xf32> to vector<2x8x1xf32>
    %112 = tpu.reciprocal %111 {approx = true} : vector<2x8x1xf32> -> vector<2x8x1xf32>
    %113 = vector.broadcast %112 : vector<2x8x1xf32> to vector<2x8x8xf32>
    %114 = arith.mulf %109, %113 : vector<2x8x8xf32>
    "tpu.trace_start"() <{level = 10 : i32, message = "bqk,bkd->bqd"}> : () -> ()
    %cst_48 = arith.constant dense<0.000000e+00> : vector<2x8x8xf32>
    %115 = tpu.matmul %114, %101, %cst_48 {dimension_numbers = #tpu.dot_dimension_numbers<[2], [1], [1], [2], [0, 0, 0, 1, 1, 2], [0], [0]>} : vector<2x8x8xf32>, vector<2x8x8xf32>, vector<2x8x8xf32> -> vector<2x8x8xf32>
    "tpu.trace_stop"() : () -> ()
    %c16 = arith.constant 16 : index
    %c384_49 = arith.constant 384 : index
    %116 = vector.load %arg1[%c16, %c384_49] : memref<32x640xf32, #tpu.memory_space<vmem>>, vector<8x32xf32>
    %117 = vector.shape_cast %115 : vector<2x8x8xf32> to vector<16x8xf32>
    %cst_50 = arith.constant dense<0.000000e+00> : vector<16x32xf32>
    %118 = tpu.matmul %117, %116, %cst_50 {dimension_numbers = #tpu.dot_dimension_numbers<[1], [0], [0], [1], [0, 0, 1, 1], [], []>} : vector<16x8xf32>, vector<8x32xf32>, vector<16x32xf32> -> vector<16x32xf32>
    %119 = arith.addf %98, %118 : vector<16x32xf32>
    %120 = vector.extract_strided_slice %41 {offsets = [0, 0, 24], sizes = [2, 8, 8], strides = [1, 1, 1]} : vector<2x8x32xf32> to vector<2x8x8xf32>
    %121 = vector.extract_strided_slice %45 {offsets = [0, 0, 24], sizes = [2, 8, 8], strides = [1, 1, 1]} : vector<2x8x32xf32> to vector<2x8x8xf32>
    %122 = vector.extract_strided_slice %49 {offsets = [0, 0, 24], sizes = [2, 8, 8], strides = [1, 1, 1]} : vector<2x8x32xf32> to vector<2x8x8xf32>
    "tpu.trace_start"() <{level = 10 : i32, message = "bqd,bkd->bqk"}> : () -> ()
    %cst_51 = arith.constant dense<0.000000e+00> : vector<2x8x8xf32>
    %123 = tpu.matmul %120, %121, %cst_51 {dimension_numbers = #tpu.dot_dimension_numbers<[2], [2], [1], [1], [0, 0, 0, 1, 1, 1], [0], [0]>} : vector<2x8x8xf32>, vector<2x8x8xf32>, vector<2x8x8xf32> -> vector<2x8x8xf32>
    "tpu.trace_stop"() : () -> ()
    %124 = vector.broadcast %55 : vector<1x8x8xf32> to vector<2x8x8xf32>
    %125 = arith.addf %123, %124 : vector<2x8x8xf32>
    %cst_52 = arith.constant dense<0xFF800000> : vector<2x8xf32>
    %126 = vector.multi_reduction <maximumf>, %125, %cst_52 [2] : vector<2x8x8xf32> to vector<2x8xf32>
    %127 = vector.shape_cast %126 : vector<2x8xf32> to vector<2x8x1xf32>
    %128 = vector.broadcast %127 : vector<2x8x1xf32> to vector<2x8x8xf32>
    %129 = arith.subf %125, %128 : vector<2x8x8xf32>
    %130 = math.exp %129 : vector<2x8x8xf32>
    %cst_53 = arith.constant dense<0.000000e+00> : vector<2x8xf32>
    %131 = vector.multi_reduction <add>, %130, %cst_53 [2] : vector<2x8x8xf32> to vector<2x8xf32>
    %132 = vector.shape_cast %131 : vector<2x8xf32> to vector<2x8x1xf32>
    %133 = tpu.reciprocal %132 {approx = true} : vector<2x8x1xf32> -> vector<2x8x1xf32>
    %134 = vector.broadcast %133 : vector<2x8x1xf32> to vector<2x8x8xf32>
    %135 = arith.mulf %130, %134 : vector<2x8x8xf32>
    "tpu.trace_start"() <{level = 10 : i32, message = "bqk,bkd->bqd"}> : () -> ()
    %cst_54 = arith.constant dense<0.000000e+00> : vector<2x8x8xf32>
    %136 = tpu.matmul %135, %122, %cst_54 {dimension_numbers = #tpu.dot_dimension_numbers<[2], [1], [1], [2], [0, 0, 0, 1, 1, 2], [0], [0]>} : vector<2x8x8xf32>, vector<2x8x8xf32>, vector<2x8x8xf32> -> vector<2x8x8xf32>
    "tpu.trace_stop"() : () -> ()
    %c24 = arith.constant 24 : index
    %c384_55 = arith.constant 384 : index
    %137 = vector.load %arg1[%c24, %c384_55] : memref<32x640xf32, #tpu.memory_space<vmem>>, vector<8x32xf32>
    %138 = vector.shape_cast %136 : vector<2x8x8xf32> to vector<16x8xf32>
    %cst_56 = arith.constant dense<0.000000e+00> : vector<16x32xf32>
    %139 = tpu.matmul %138, %137, %cst_56 {dimension_numbers = #tpu.dot_dimension_numbers<[1], [0], [0], [1], [0, 0, 1, 1], [], []>} : vector<16x8xf32>, vector<8x32xf32>, vector<16x32xf32> -> vector<16x32xf32>
    %140 = arith.addf %119, %139 : vector<16x32xf32>
    %141 = vector.broadcast %11 : vector<1x32xf32> to vector<16x32xf32>
    %142 = arith.addf %140, %141 : vector<16x32xf32>
    %143 = arith.addf %142, %0 : vector<16x32xf32>
    %cst_57 = arith.constant dense<0.000000e+00> : vector<16xf32>
    %144 = vector.multi_reduction <add>, %143, %cst_57 [1] : vector<16x32xf32> to vector<16xf32>
    %145 = vector.shape_cast %144 : vector<16xf32> to vector<16x1xf32>
    %cst_58 = arith.constant 3.200000e+01 : f32
    %146 = vector.broadcast %cst_58 : f32 to vector<16x1xf32>
    %147 = arith.divf %145, %146 : vector<16x1xf32>
    %148 = vector.broadcast %147 : vector<16x1xf32> to vector<16x32xf32>
    %149 = arith.subf %143, %148 : vector<16x32xf32>
    %150 = arith.mulf %149, %149 : vector<16x32xf32>
    %cst_59 = arith.constant dense<0.000000e+00> : vector<16xf32>
    %151 = vector.multi_reduction <add>, %150, %cst_59 [1] : vector<16x32xf32> to vector<16xf32>
    %152 = vector.shape_cast %151 : vector<16xf32> to vector<16x1xf32>
    %cst_60 = arith.constant 3.200000e+01 : f32
    %153 = vector.broadcast %cst_60 : f32 to vector<16x1xf32>
    %154 = arith.divf %152, %153 : vector<16x1xf32>
    %155 = vector.broadcast %147 : vector<16x1xf32> to vector<16x32xf32>
    %156 = arith.subf %143, %155 : vector<16x32xf32>
    %cst_61 = arith.constant 9.99999974E-6 : f32
    %157 = vector.broadcast %cst_61 : f32 to vector<16x1xf32>
    %158 = arith.addf %154, %157 : vector<16x1xf32>
    %159 = math.rsqrt %158 : vector<16x1xf32>
    %160 = vector.broadcast %159 : vector<16x1xf32> to vector<16x32xf32>
    %161 = arith.mulf %156, %160 : vector<16x32xf32>
    %162 = vector.broadcast %12 : vector<1x32xf32> to vector<16x32xf32>
    %163 = arith.mulf %161, %162 : vector<16x32xf32>
    %164 = vector.broadcast %13 : vector<1x32xf32> to vector<16x32xf32>
    %165 = arith.addf %163, %164 : vector<16x32xf32>
    %cst_62 = arith.constant dense<0.000000e+00> : vector<16x128xf32>
    %166 = tpu.matmul %165, %4, %cst_62 {dimension_numbers = #tpu.dot_dimension_numbers<[1], [0], [0], [1], [0, 0, 1, 1], [], []>} : vector<16x32xf32>, vector<32x128xf32>, vector<16x128xf32> -> vector<16x128xf32>
    %167 = vector.broadcast %14 : vector<1x128xf32> to vector<16x128xf32>
    %168 = arith.addf %166, %167 : vector<16x128xf32>
    %cst_63 = arith.constant 1.702000e+00 : f32
    %169 = vector.broadcast %cst_63 : f32 to vector<16x128xf32>
    %170 = arith.mulf %169, %168 : vector<16x128xf32>
    %171 = arith.negf %170 : vector<16x128xf32>
    %172 = math.exp %171 : vector<16x128xf32>
    %cst_64 = arith.constant 1.000000e+00 : f32
    %173 = vector.broadcast %cst_64 : f32 to vector<16x128xf32>
    %174 = arith.addf %173, %172 : vector<16x128xf32>
    %175 = arith.divf %173, %174 : vector<16x128xf32>
    %176 = arith.mulf %168, %175 : vector<16x128xf32>
    %cst_65 = arith.constant dense<0.000000e+00> : vector<16x32xf32>
    %177 = tpu.matmul %176, %5, %cst_65 {dimension_numbers = #tpu.dot_dimension_numbers<[1], [0], [0], [1], [0, 0, 1, 1], [], []>} : vector<16x128xf32>, vector<128x32xf32>, vector<16x32xf32> -> vector<16x32xf32>
    %178 = vector.broadcast %15 : vector<1x32xf32> to vector<16x32xf32>
    %179 = arith.addf %177, %178 : vector<16x32xf32>
    %180 = arith.addf %179, %143 : vector<16x32xf32>
    %c0_66 = arith.constant 0 : index
    %c0_67 = arith.constant 0 : index
    %181 = vector.load %arg4[%c0_66, %c0_67] : memref<16x32xf32, #tpu.memory_space<vmem>>, vector<16x32xf32>
    tpu.vector_store %arg4[%c0_66, %c0_67], %180 {strides = array<i32>} : memref<16x32xf32, #tpu.memory_space<vmem>>, vector<16x32xf32>,
    return
  }
}

</mosaic_0001>

<llo_original>
// kernel: clip_layer.1
$region0: #{clip_layer.1}
  #allocation0 [shape = 'u32[]', space=smem, size = 0x4, offset = 0x4, fixed_abs, tag = 'smem constant byte address 0x4 - core index']
  #allocation1 [shape = 'u32[144,128]{1,0:T(1,128)}', space=vmem, size = 0x12000, scoped, tag = 'internal scratch']
  %s0 = inlined_call_operand.hbm [shape: f32[16,32], index: 0, kind: input, shape index: {}]
  %s1 = inlined_call_operand.vmem [shape: f32[32,640], index: 1, kind: input, shape index: {}]
  %s2 = inlined_call_operand.vmem [shape: f32[128,32], index: 2, kind: input, shape index: {}]
  %s3 = inlined_call_operand.vmem [shape: f32[1,1280], index: 3, kind: input, shape index: {}]
  %s4 = inlined_call_operand.hbm [shape: f32[16,32], index: 4, kind: output, shape index: {}]
  %s5 = sld [smem:[#allocation0]]
  $region30: #{clip_layer.1} parent=0
    _
  %s7 = ssub.s32 1, %s5
  %s8 = scalar_select 0, %s7, %s5
  $region1: #{clip_layer.1} parent=0
    #allocation2 [shape = 'u8[8192]{0}', space=vmem, size = 0x2000, scoped, tag = 'input window, operand 0, single buffered']
    #allocation3 [shape = 's32[1]{0}', space=sflag, size = 0x4, scoped, tag = 'scoped memory for clip_layer.1']
    #allocation4 [shape = 's32[1]{0}', space=sflag, size = 0x4, scoped, tag = 'scoped memory for clip_layer.1']
    #allocation5 [shape = 'u8[8192]{0}', space=vmem, size = 0x2000, scoped, tag = 'output window, operand 0, single buffered']
    %9 = vsyncpa [#allocation3], 0
    %10 = vsyncpa [#allocation4], 0
    // Predicated region
    $region2: #{clip_layer.1} parent=1 // pred_check
      _
    $region3: #{clip_layer.1} parent=1 // pred_check_branch
      %12 = sbr.rel (0) target = $region5
    $region4: #{clip_layer.1} parent=1 // pred_region
      %s14 = ssub.s32 256, 256
      %15 = vsyncadd [#allocation3], %s14
      %s16 = sshll.u32 [#allocation2], 4
      %s17 = int_to_ptr.vmem [resolvable:$true] %s16
      %22 = dma.hbm_to_vmem [thread:$0]  %s0, 256, %s17, [#allocation3], 128, 128, 8
    $region5: #{clip_layer.1} parent=1 // pred_fallthru
      _
    // Predicated region
    $region6: #{clip_layer.1} parent=1 // pred_check
      _
    $region7: #{clip_layer.1} parent=1 // pred_check_branch
      %24 = sbr.rel (0) target = $region9
    $region8: #{clip_layer.1} parent=1 // pred_region
      _
    $region9: #{clip_layer.1} parent=1 // pred_fallthru
      _
    // Predicated region
    $region10: #{clip_layer.1} parent=1 // pred_check
      _
    $region11: #{clip_layer.1} parent=1 // pred_check_branch
      %26 = sbr.rel (0) target = $region13
    $region12: #{clip_layer.1} parent=1 // pred_region
      _
    $region13: #{clip_layer.1} parent=1 // pred_fallthru
      _
    // Predicated region
    $region14: #{clip_layer.1} parent=1 // pred_check
      _
    $region15: #{clip_layer.1} parent=1 // pred_check_branch
      %28 = sbr.rel (0) target = $region17
    $region16: #{clip_layer.1} parent=1 // pred_region
      _
    $region17: #{clip_layer.1} parent=1 // pred_fallthru
      _
    // Predicated region
    $region18: #{clip_layer.1} parent=1 // pred_check
      _
    $region19: #{clip_layer.1} parent=1 // pred_check_branch
      %30 = sbr.rel (0) target = $region21
    $region20: #{clip_layer.1} parent=1 // pred_region
      %31 = dma.done [#allocation3], 256
    $region21: #{clip_layer.1} parent=1 // pred_fallthru
      _
    %v32 = vld [vmem:[#allocation2] sm:$0xff]
    %v33 = vld [vmem:[#allocation2 + $0x8] sm:$0xff]
    %v34 = vld [vmem:[%s1] sm:$0xff]
    %v35 = vld [vmem:[%s1 + $0x28] sm:$0xff]
    %v36 = vld [vmem:[%s1 + $0x50] sm:$0xff]
    %v37 = vld [vmem:[%s1 + $0x78] sm:$0xff]
    %v38 = vld [vmem:[%s1 + $0x8] sm:$0xff]
    %v39 = vld [vmem:[%s1 + $0x30] sm:$0xff]
    %v40 = vld [vmem:[%s1 + $0x58] sm:$0xff]
    %v41 = vld [vmem:[%s1 + $0x80] sm:$0xff]
    %v42 = vld [vmem:[%s1 + $0x10] sm:$0xff]
    %v43 = vld [vmem:[%s1 + $0x38] sm:$0xff]
    %v44 = vld [vmem:[%s1 + $0x60] sm:$0xff]
    %v45 = vld [vmem:[%s1 + $0x88] sm:$0xff]
    %v46 = vld [vmem:[%s1 + $0x20] sm:$0xff]
    %v47 = vld [vmem:[%s1 + $0x48] sm:$0xff]
    %v48 = vld [vmem:[%s1 + $0x70] sm:$0xff]
    %v49 = vld [vmem:[%s1 + $0x98] sm:$0xff]
    %v50 = vld [vmem:[%s2] sm:$0xff]
    %v51 = vld [vmem:[%s2 + $0x8] sm:$0xff]
    %v52 = vld [vmem:[%s2 + $0x10] sm:$0xff]
    %v53 = vld [vmem:[%s2 + $0x18] sm:$0xff]
    %v54 = vld [vmem:[%s2 + $0x20] sm:$0xff]
    %v55 = vld [vmem:[%s2 + $0x28] sm:$0xff]
    %v56 = vld [vmem:[%s2 + $0x30] sm:$0xff]
    %v57 = vld [vmem:[%s2 + $0x38] sm:$0xff]
    %v58 = vld [vmem:[%s2 + $0x40] sm:$0xff]
    %v59 = vld [vmem:[%s2 + $0x48] sm:$0xff]
    %v60 = vld [vmem:[%s2 + $0x50] sm:$0xff]
    %v61 = vld [vmem:[%s2 + $0x58] sm:$0xff]
    %v62 = vld [vmem:[%s2 + $0x60] sm:$0xff]
    %v63 = vld [vmem:[%s2 + $0x68] sm:$0xff]
    %v64 = vld [vmem:[%s2 + $0x70] sm:$0xff]
    %v65 = vld [vmem:[%s2 + $0x78] sm:$0xff]
    %v66 = vld [vmem:[%s3] sm:$0x1]
    %v67 = vld [vmem:[%s3 + $0x1] sm:$0x1]
    %v68 = vld [vmem:[%s3 + $0x2] sm:$0x1]
    %v69 = vld [vmem:[%s3 + $0x3] sm:$0x1]
    %v70 = vld [vmem:[%s3 + $0x4] sm:$0x1]
    %v71 = vld [vmem:[%s3 + $0x5] sm:$0x1]
    %v72 = vld [vmem:[%s3 + $0x6] sm:$0x1]
    %v73 = vld [vmem:[%s3 + $0x7] sm:$0x1]
    %v74 = vld [vmem:[%s3 + $0x8] sm:$0x1]
    %v75 = vld [vmem:[%s3 + $0x9] sm:$0x1]
    %vm76 = vcmask 261120
    %v77 = vsel %vm76, %v32, 0.0
    %78 = vadd.xlane.f32.xlu0 %v77
    %v79 = vpop.xlane.xlu0 %78
    %v80 = vsel %vm76, %v33, 0.0
    %81 = vadd.xlane.f32.xlu0 %v80
    %v82 = vpop.xlane.xlu0 %81
    %v83 = vrcp.pop 32.0
    %v84 = vmul.f32 %v79, %v83
    %v85 = vmul.f32 %v82, %v83
    %v86 = vsub.f32 %v32, %v84
    %v87 = vsub.f32 %v33, %v85
    %v88 = vmul.f32 %v86, %v86
    %v89 = vmul.f32 %v87, %v87
    %v90 = vsel %vm76, %v88, 0.0
    %91 = vadd.xlane.f32.xlu0 %v90
    %v92 = vpop.xlane.xlu0 %91
    %v93 = vsel %vm76, %v89, 0.0
    %94 = vadd.xlane.f32.xlu0 %v93
    %v95 = vpop.xlane.xlu0 %94
    %v96 = vmul.f32 %v92, %v83
    %v97 = vmul.f32 %v95, %v83
    %v98 = vadd.f32 %v96, 1e-05
    %v99 = vadd.f32 %v97, 1e-05
    %v100 = vrsqrt.pop %v98
    %v101 = vrsqrt.pop %v99
    %v102 = vmul.f32 %v86, %v100
    %v103 = vmul.f32 %v87, %v101
    %v105 = vlaneseq
    %v106 = vshrl.u32 %v105, 7
    %v107 = vsub.s32 0, %v106
    %v108 = vrot.slane %v66, %v107
    %v110 = vmul.f32 %v102, %v108
    %v111 = vmul.f32 %v103, %v108
    %v113 = vlaneseq
    %v114 = vshrl.u32 %v113, 7
    %v115 = vsub.s32 0, %v114
    %v116 = vrot.slane %v67, %v115
    %v118 = vadd.f32 %v110, %v116
    %v119 = vadd.f32 %v111, %v116
    %v121 = vlaneseq
    %v122 = vshrl.u32 %v121, 7
    %v123 = vsub.s32 0, %v122
    %v124 = vrot.slane %v68, %v123
    %v127 = vsel %vm76, %v118, 0
    %v130 = vsel %vm76, %v119, 0
    %132 = vmatprep.subr.mxu0 0.0
    %133 = vmatpush1.msra.mxu0 %v34
    %134 = vmatprep.subr.mxu0 0.0
    %135 = vmatpush1.msra.mxu0 %v35
    %136 = vmatprep.subr.mxu0 0.0
    %137 = vmatpush1.msra.mxu0 %v36
    %138 = vmatprep.subr.mxu0 0.0
    %139 = vmatpush1.msra.mxu0 %v37
    %140 = vmatprep.subr.mxu0 0.0
    %141 = vmatpush1.msra.mxu0 0.0
    %142 = vmatprep.subr.mxu0 0.0
    %143 = vmatpush1.msra.mxu0 0.0
    %144 = vmatprep.subr.mxu0 0.0
    %145 = vmatpush1.msra.mxu0 0.0
    %146 = vmatprep.subr.mxu0 0.0
    %147 = vmatpush1.msra.mxu0 0.0
    %148 = vmatprep.subr.mxu0 0.0
    %149 = vmatpush1.msra.mxu0 0.0
    %150 = vmatprep.subr.mxu0 0.0
    %151 = vmatpush1.msra.mxu0 0.0
    %152 = vmatprep.subr.mxu0 0.0
    %153 = vmatpush1.msra.mxu0 0.0
    %154 = vmatprep.subr.mxu0 0.0
    %155 = vmatpush1.msra.mxu0 0.0
    %156 = vmatprep.subr.mxu0 0.0
    %157 = vmatpush1.msra.mxu0 0.0
    %158 = vmatprep.subr.mxu0 0.0
    %159 = vmatpush1.msra.mxu0 0.0
    %160 = vmatprep.subr.mxu0 0.0
    %161 = vmatpush1.msra.mxu0 0.0
    %162 = vmatprep.subr.mxu0 0.0
    %163 = vmatpush1.msra.mxu0 0.0
    %164 = vmatprep.subr.mxu0 0.0
    %165 = vmatpush1.msra.mxu0 0.0
    %166 = vmatprep.subr.mxu0 0.0
    %167 = vmatpush1.msra.mxu0 0.0
    %168 = vmatprep.subr.mxu0 0.0
    %169 = vmatpush1.msra.mxu0 0.0
    %170 = vmatprep.subr.mxu0 0.0
    %171 = vmatpush1.msra.mxu0 0.0
    %172 = vmatprep.subr.mxu0 0.0
    %173 = vmatpush1.msra.mxu0 0.0
    %174 = vmatprep.subr.mxu0 0.0
    %175 = vmatpush1.msra.mxu0 0.0
    %176 = vmatprep.subr.mxu0 0.0
    %177 = vmatpush1.msra.mxu0 0.0
    %178 = vmatprep.subr.mxu0 0.0
    %179 = vmatpush1.msra.mxu0 0.0
    %180 = vmatprep.subr.mxu0 0.0
    %181 = vmatpush1.msra.mxu0 0.0
    %182 = vmatprep.subr.mxu0 0.0
    %183 = vmatpush1.msra.mxu0 0.0
    %184 = vmatprep.subr.mxu0 0.0
    %185 = vmatpush1.msra.mxu0 0.0
    %186 = vmatprep.subr.mxu0 0.0
    %187 = vmatpush1.msra.mxu0 0.0
    %188 = vmatprep.subr.mxu0 0.0
    %189 = vmatpush1.msra.mxu0 0.0
    %190 = vmatprep.subr.mxu0 0.0
    %191 = vmatpush1.msra.mxu0 0.0
    %192 = vmatprep.subr.mxu0 0.0
    %193 = vmatpush1.msra.mxu0 0.0
    %194 = vmatprep.subr.mxu0 0.0
    %195 = vmatpush1.msra.mxu0 0.0
    %196 = vmatprep.mubr.f32.mxu0 0.0
    %197 = vmatmul.mubr.f32.gmra.mrb[0].mxu0 %v127
    %v198 = vpop.f32.mrb[0].mxu0
    %v199 = vadd.f32 %v124, %v198
    %v200 = vpop.f32.mrb[0].mxu0
    %201 = vmatprep.mubr.f32.mxu0 0.0
    %202 = vmatmul.mubr.f32.gmra.mrb[0].mxu0 %v130
    %v203 = vpop.f32.mrb[0].mxu0
    %v204 = vadd.f32 %v124, %v203
    %v205 = vpop.f32.mrb[0].mxu0
    %206 = vdwg.mxu0
    %v208 = vlaneseq
    %v209 = vshrl.u32 %v208, 7
    %v210 = vsub.s32 0, %v209
    %v211 = vrot.slane %v69, %v210
    %213 = vmatprep.subr.mxu0 0.0
    %214 = vmatpush1.msra.mxu0 %v38
    %215 = vmatprep.subr.mxu0 0.0
    %216 = vmatpush1.msra.mxu0 %v39
    %217 = vmatprep.subr.mxu0 0.0
    %218 = vmatpush1.msra.mxu0 %v40
    %219 = vmatprep.subr.mxu0 0.0
    %220 = vmatpush1.msra.mxu0 %v41
    %221 = vmatprep.subr.mxu0 0.0
    %222 = vmatpush1.msra.mxu0 0.0
    %223 = vmatprep.subr.mxu0 0.0
    %224 = vmatpush1.msra.mxu0 0.0
    %225 = vmatprep.subr.mxu0 0.0
    %226 = vmatpush1.msra.mxu0 0.0
    %227 = vmatprep.subr.mxu0 0.0
    %228 = vmatpush1.msra.mxu0 0.0
    %229 = vmatprep.subr.mxu0 0.0
    %230 = vmatpush1.msra.mxu0 0.0
    %231 = vmatprep.subr.mxu0 0.0
    %232 = vmatpush1.msra.mxu0 0.0
    %233 = vmatprep.subr.mxu0 0.0
    %234 = vmatpush1.msra.mxu0 0.0
    %235 = vmatprep.subr.mxu0 0.0
    %236 = vmatpush1.msra.mxu0 0.0
    %237 = vmatprep.subr.mxu0 0.0
    %238 = vmatpush1.msra.mxu0 0.0
    %239 = vmatprep.subr.mxu0 0.0
    %240 = vmatpush1.msra.mxu0 0.0
    %241 = vmatprep.subr.mxu0 0.0
    %242 = vmatpush1.msra.mxu0 0.0
    %243 = vmatprep.subr.mxu0 0.0
    %244 = vmatpush1.msra.mxu0 0.0
    %245 = vmatprep.subr.mxu0 0.0
    %246 = vmatpush1.msra.mxu0 0.0
    %247 = vmatprep.subr.mxu0 0.0
    %248 = vmatpush1.msra.mxu0 0.0
    %249 = vmatprep.subr.mxu0 0.0
    %250 = vmatpush1.msra.mxu0 0.0
    %251 = vmatprep.subr.mxu0 0.0
    %252 = vmatpush1.msra.mxu0 0.0
    %253 = vmatprep.subr.mxu0 0.0
    %254 = vmatpush1.msra.mxu0 0.0
    %255 = vmatprep.subr.mxu0 0.0
    %256 = vmatpush1.msra.mxu0 0.0
    %257 = vmatprep.subr.mxu0 0.0
    %258 = vmatpush1.msra.mxu0 0.0
    %259 = vmatprep.subr.mxu0 0.0
    %260 = vmatpush1.msra.mxu0 0.0
    %261 = vmatprep.subr.mxu0 0.0
    %262 = vmatpush1.msra.mxu0 0.0
    %263 = vmatprep.subr.mxu0 0.0
    %264 = vmatpush1.msra.mxu0 0.0
    %265 = vmatprep.subr.mxu0 0.0
    %266 = vmatpush1.msra.mxu0 0.0
    %267 = vmatprep.subr.mxu0 0.0
    %268 = vmatpush1.msra.mxu0 0.0
    %269 = vmatprep.subr.mxu0 0.0
    %270 = vmatpush1.msra.mxu0 0.0
    %271 = vmatprep.subr.mxu0 0.0
    %272 = vmatpush1.msra.mxu0 0.0
    %273 = vmatprep.subr.mxu0 0.0
    %274 = vmatpush1.msra.mxu0 0.0
    %275 = vmatprep.subr.mxu0 0.0
    %276 = vmatpush1.msra.mxu0 0.0
    %277 = vmatprep.mubr.f32.mxu0 0.0
    %278 = vmatmul.mubr.f32.gmra.mrb[0].mxu0 %v127
    %v279 = vpop.f32.mrb[0].mxu0
    %v280 = vadd.f32 %v211, %v279
    %v281 = vpop.f32.mrb[0].mxu0
    %282 = vmatprep.mubr.f32.mxu0 0.0
    %283 = vmatmul.mubr.f32.gmra.mrb[0].mxu0 %v130
    %v284 = vpop.f32.mrb[0].mxu0
    %v285 = vadd.f32 %v211, %v284
    %v286 = vpop.f32.mrb[0].mxu0
    %287 = vdwg.mxu0
    %v289 = vlaneseq
    %v290 = vshrl.u32 %v289, 7
    %v291 = vsub.s32 0, %v290
    %v292 = vrot.slane %v70, %v291
    %294 = vmatprep.subr.mxu0 0.0
    %295 = vmatpush1.msra.mxu0 %v42
    %296 = vmatprep.subr.mxu0 0.0
    %297 = vmatpush1.msra.mxu0 %v43
    %298 = vmatprep.subr.mxu0 0.0
    %299 = vmatpush1.msra.mxu0 %v44
    %300 = vmatprep.subr.mxu0 0.0
    %301 = vmatpush1.msra.mxu0 %v45
    %302 = vmatprep.subr.mxu0 0.0
    %303 = vmatpush1.msra.mxu0 0.0
    %304 = vmatprep.subr.mxu0 0.0
    %305 = vmatpush1.msra.mxu0 0.0
    %306 = vmatprep.subr.mxu0 0.0
    %307 = vmatpush1.msra.mxu0 0.0
    %308 = vmatprep.subr.mxu0 0.0
    %309 = vmatpush1.msra.mxu0 0.0
    %310 = vmatprep.subr.mxu0 0.0
    %311 = vmatpush1.msra.mxu0 0.0
    %312 = vmatprep.subr.mxu0 0.0
    %313 = vmatpush1.msra.mxu0 0.0
    %314 = vmatprep.subr.mxu0 0.0
    %315 = vmatpush1.msra.mxu0 0.0
    %316 = vmatprep.subr.mxu0 0.0
    %317 = vmatpush1.msra.mxu0 0.0
    %318 = vmatprep.subr.mxu0 0.0
    %319 = vmatpush1.msra.mxu0 0.0
    %320 = vmatprep.subr.mxu0 0.0
    %321 = vmatpush1.msra.mxu0 0.0
    %322 = vmatprep.subr.mxu0 0.0
    %323 = vmatpush1.msra.mxu0 0.0
    %324 = vmatprep.subr.mxu0 0.0
    %325 = vmatpush1.msra.mxu0 0.0
    %326 = vmatprep.subr.mxu0 0.0
    %327 = vmatpush1.msra.mxu0 0.0
    %328 = vmatprep.subr.mxu0 0.0
    %329 = vmatpush1.msra.mxu0 0.0
    %330 = vmatprep.subr.mxu0 0.0
    %331 = vmatpush1.msra.mxu0 0.0
    %332 = vmatprep.subr.mxu0 0.0
    %333 = vmatpush1.msra.mxu0 0.0
    %334 = vmatprep.subr.mxu0 0.0
    %335 = vmatpush1.msra.mxu0 0.0
    %336 = vmatprep.subr.mxu0 0.0
    %337 = vmatpush1.msra.mxu0 0.0
    %338 = vmatprep.subr.mxu0 0.0
    %339 = vmatpush1.msra.mxu0 0.0
    %340 = vmatprep.subr.mxu0 0.0
    %341 = vmatpush1.msra.mxu0 0.0
    %342 = vmatprep.subr.mxu0 0.0
    %343 = vmatpush1.msra.mxu0 0.0
    %344 = vmatprep.subr.mxu0 0.0
    %345 = vmatpush1.msra.mxu0 0.0
    %346 = vmatprep.subr.mxu0 0.0
    %347 = vmatpush1.msra.mxu0 0.0
    %348 = vmatprep.subr.mxu0 0.0
    %349 = vmatpush1.msra.mxu0 0.0
    %350 = vmatprep.subr.mxu0 0.0
    %351 = vmatpush1.msra.mxu0 0.0
    %352 = vmatprep.subr.mxu0 0.0
    %353 = vmatpush1.msra.mxu0 0.0
    %354 = vmatprep.subr.mxu0 0.0
    %355 = vmatpush1.msra.mxu0 0.0
    %356 = vmatprep.subr.mxu0 0.0
    %357 = vmatpush1.msra.mxu0 0.0
    %358 = vmatprep.mubr.f32.mxu0 0.0
    %359 = vmatmul.mubr.f32.gmra.mrb[0].mxu0 %v127
    %v360 = vpop.f32.mrb[0].mxu0
    %v361 = vadd.f32 %v292, %v360
    %v362 = vpop.f32.mrb[0].mxu0
    %363 = vmatprep.mubr.f32.mxu0 0.0
    %364 = vmatmul.mubr.f32.gmra.mrb[0].mxu0 %v130
    %v365 = vpop.f32.mrb[0].mxu0
    %v366 = vadd.f32 %v292, %v365
    %v367 = vpop.f32.mrb[0].mxu0
    %368 = vdwg.mxu0
    %v369 = vlaneseq
    %v370 = vshrl.u32 %v369, 7
    %v371 = vlaneseq
    %v372 = vand.u32 %v371, 127
    %vm373 = vcmp.gt.s32.totalorder %v372, %v370
    %v374 = vsel %vm373, -1e+30, 0.0
    %vm375 = vcmask 64512
    %v377 = vsel %vm375, %v199, 0
    %v380 = vsel %vm375, %v280, 0
    %382 = vmatprep.subr.mxu0 0.0
    %383 = vmatpush1.xpose.msra.mxu0 %v380
    %384 = vmatprep.subr.mxu0 0.0
    %385 = vmatpush1.xpose.msra.mxu0 0.0
    %386 = vmatprep.subr.mxu0 0.0
    %387 = vmatpush1.xpose.msra.mxu0 0.0
    %388 = vmatprep.subr.mxu0 0.0
    %389 = vmatpush1.xpose.msra.mxu0 0.0
    %390 = vmatprep.subr.mxu0 0.0
    %391 = vmatpush1.xpose.msra.mxu0 0.0
    %392 = vmatprep.subr.mxu0 0.0
    %393 = vmatpush1.xpose.msra.mxu0 0.0
    %394 = vmatprep.subr.mxu0 0.0
    %395 = vmatpush1.xpose.msra.mxu0 0.0
    %396 = vmatprep.subr.mxu0 0.0
    %397 = vmatpush1.xpose.msra.mxu0 0.0
    %398 = vmatprep.subr.mxu0 0.0
    %399 = vmatpush1.xpose.msra.mxu0 0.0
    %400 = vmatprep.subr.mxu0 0.0
    %401 = vmatpush1.xpose.msra.mxu0 0.0
    %402 = vmatprep.subr.mxu0 0.0
    %403 = vmatpush1.xpose.msra.mxu0 0.0
    %404 = vmatprep.subr.mxu0 0.0
    %405 = vmatpush1.xpose.msra.mxu0 0.0
    %406 = vmatprep.subr.mxu0 0.0
    %407 = vmatpush1.xpose.msra.mxu0 0.0
    %408 = vmatprep.subr.mxu0 0.0
    %409 = vmatpush1.xpose.msra.mxu0 0.0
    %410 = vmatprep.subr.mxu0 0.0
    %411 = vmatpush1.xpose.msra.mxu0 0.0
    %412 = vmatprep.subr.mxu0 0.0
    %413 = vmatpush1.xpose.msra.mxu0 0.0
    %414 = vmatprep.subr.mxu0 0.0
    %415 = vmatpush1.xpose.msra.mxu0 0.0
    %416 = vmatprep.subr.mxu0 0.0
    %417 = vmatpush1.xpose.msra.mxu0 0.0
    %418 = vmatprep.subr.mxu0 0.0
    %419 = vmatpush1.xpose.msra.mxu0 0.0
    %420 = vmatprep.subr.mxu0 0.0
    %421 = vmatpush1.xpose.msra.mxu0 0.0
    %422 = vmatprep.subr.mxu0 0.0
    %423 = vmatpush1.xpose.msra.mxu0 0.0
    %424 = vmatprep.subr.mxu0 0.0
    %425 = vmatpush1.xpose.msra.mxu0 0.0
    %426 = vmatprep.subr.mxu0 0.0
    %427 = vmatpush1.xpose.msra.mxu0 0.0
    %428 = vmatprep.subr.mxu0 0.0
    %429 = vmatpush1.xpose.msra.mxu0 0.0
    %430 = vmatprep.subr.mxu0 0.0
    %431 = vmatpush1.xpose.msra.mxu0 0.0
    %432 = vmatprep.subr.mxu0 0.0
    %433 = vmatpush1.xpose.msra.mxu0 0.0
    %434 = vmatprep.subr.mxu0 0.0
    %435 = vmatpush1.xpose.msra.mxu0 0.0
    %436 = vmatprep.subr.mxu0 0.0
    %437 = vmatpush1.xpose.msra.mxu0 0.0
    %438 = vmatprep.subr.mxu0 0.0
    %439 = vmatpush1.xpose.msra.mxu0 0.0
    %440 = vmatprep.subr.mxu0 0.0
    %441 = vmatpush1.xpose.msra.mxu0 0.0
    %442 = vmatprep.subr.mxu0 0.0
    %443 = vmatpush1.xpose.msra.mxu0 0.0
    %444 = vmatprep.subr.mxu0 0.0
    %445 = vmatpush1.xpose.msra.mxu0 0.0
    %446 = vmatprep.mubr.f32.mxu0 0.0
    %447 = vmatmul.mubr.f32.gmra.mrb[0].mxu0 %v377
    %v448 = vpop.f32.mrb[0].mxu0
    %v449 = vadd.f32 %v374, %v448
    %v450 = vpop.f32.mrb[0].mxu0
    %451 = vdwg.mxu0
    %v453 = vsel %vm375, %v204, 0
    %v456 = vsel %vm375, %v285, 0
    %458 = vmatprep.subr.mxu0 0.0
    %459 = vmatpush1.xpose.msra.mxu0 %v456
    %460 = vmatprep.subr.mxu0 0.0
    %461 = vmatpush1.xpose.msra.mxu0 0.0
    %462 = vmatprep.subr.mxu0 0.0
    %463 = vmatpush1.xpose.msra.mxu0 0.0
    %464 = vmatprep.subr.mxu0 0.0
    %465 = vmatpush1.xpose.msra.mxu0 0.0
    %466 = vmatprep.subr.mxu0 0.0
    %467 = vmatpush1.xpose.msra.mxu0 0.0
    %468 = vmatprep.subr.mxu0 0.0
    %469 = vmatpush1.xpose.msra.mxu0 0.0
    %470 = vmatprep.subr.mxu0 0.0
    %471 = vmatpush1.xpose.msra.mxu0 0.0
    %472 = vmatprep.subr.mxu0 0.0
    %473 = vmatpush1.xpose.msra.mxu0 0.0
    %474 = vmatprep.subr.mxu0 0.0
    %475 = vmatpush1.xpose.msra.mxu0 0.0
    %476 = vmatprep.subr.mxu0 0.0
    %477 = vmatpush1.xpose.msra.mxu0 0.0
    %478 = vmatprep.subr.mxu0 0.0
    %479 = vmatpush1.xpose.msra.mxu0 0.0
    %480 = vmatprep.subr.mxu0 0.0
    %481 = vmatpush1.xpose.msra.mxu0 0.0
    %482 = vmatprep.subr.mxu0 0.0
    %483 = vmatpush1.xpose.msra.mxu0 0.0
    %484 = vmatprep.subr.mxu0 0.0
    %485 = vmatpush1.xpose.msra.mxu0 0.0
    %486 = vmatprep.subr.mxu0 0.0
    %487 = vmatpush1.xpose.msra.mxu0 0.0
    %488 = vmatprep.subr.mxu0 0.0
    %489 = vmatpush1.xpose.msra.mxu0 0.0
    %490 = vmatprep.subr.mxu0 0.0
    %491 = vmatpush1.xpose.msra.mxu0 0.0
    %492 = vmatprep.subr.mxu0 0.0
    %493 = vmatpush1.xpose.msra.mxu0 0.0
    %494 = vmatprep.subr.mxu0 0.0
    %495 = vmatpush1.xpose.msra.mxu0 0.0
    %496 = vmatprep.subr.mxu0 0.0
    %497 = vmatpush1.xpose.msra.mxu0 0.0
    %498 = vmatprep.subr.mxu0 0.0
    %499 = vmatpush1.xpose.msra.mxu0 0.0
    %500 = vmatprep.subr.mxu0 0.0
    %501 = vmatpush1.xpose.msra.mxu0 0.0
    %502 = vmatprep.subr.mxu0 0.0
    %503 = vmatpush1.xpose.msra.mxu0 0.0
    %504 = vmatprep.subr.mxu0 0.0
    %505 = vmatpush1.xpose.msra.mxu0 0.0
    %506 = vmatprep.subr.mxu0 0.0
    %507 = vmatpush1.xpose.msra.mxu0 0.0
    %508 = vmatprep.subr.mxu0 0.0
    %509 = vmatpush1.xpose.msra.mxu0 0.0
    %510 = vmatprep.subr.mxu0 0.0
    %511 = vmatpush1.xpose.msra.mxu0 0.0
    %512 = vmatprep.subr.mxu0 0.0
    %513 = vmatpush1.xpose.msra.mxu0 0.0
    %514 = vmatprep.subr.mxu0 0.0
    %515 = vmatpush1.xpose.msra.mxu0 0.0
    %516 = vmatprep.subr.mxu0 0.0
    %517 = vmatpush1.xpose.msra.mxu0 0.0
    %518 = vmatprep.subr.mxu0 0.0
    %519 = vmatpush1.xpose.msra.mxu0 0.0
    %520 = vmatprep.subr.mxu0 0.0
    %521 = vmatpush1.xpose.msra.mxu0 0.0
    %522 = vmatprep.mubr.f32.mxu0 0.0
    %523 = vmatmul.mubr.f32.gmra.mrb[0].mxu0 %v453
    %v524 = vpop.f32.mrb[0].mxu0
    %v525 = vadd.f32 %v374, %v524
    %v526 = vpop.f32.mrb[0].mxu0
    %527 = vdwg.mxu0
    %v528 = vsel %vm375, %v449, -inf
    %529 = vmax.xlane.f32.xlu0 %v528
    %v530 = vpop.xlane.xlu0 %529
    %v531 = vsel %vm375, %v525, -inf
    %532 = vmax.xlane.f32.xlu0 %v531
    %v533 = vpop.xlane.xlu0 %532
    %v534 = vsub.f32 %v449, %v530
    %v535 = vsub.f32 %v525, %v533
    %v536 = vmul.f32 %v534, 1.442695
    %v537 = vpow.pop %v536
    %v538 = vmul.f32 %v535, 1.442695
    %v539 = vpow.pop %v538
    %v540 = vsel %vm375, %v537, 0.0
    %541 = vadd.xlane.f32.xlu0 %v540
    %v542 = vpop.xlane.xlu0 %541
    %v543 = vsel %vm375, %v539, 0.0
    %544 = vadd.xlane.f32.xlu0 %v543
    %v545 = vpop.xlane.xlu0 %544
    %v546 = vrcp.pop %v542
    %v547 = vrcp.pop %v545
    %v548 = vmul.f32 %v537, %v546
    %v549 = vmul.f32 %v539, %v547
    %v551 = vsel %vm375, %v548, 0
    %553 = vmatprep.subr.mxu0 0.0
    %554 = vmatpush1.msra.mxu0 %v361
    %555 = vmatprep.subr.mxu0 0.0
    %556 = vmatpush1.msra.mxu0 0.0
    %557 = vmatprep.subr.mxu0 0.0
    %558 = vmatpush1.msra.mxu0 0.0
    %559 = vmatprep.subr.mxu0 0.0
    %560 = vmatpush1.msra.mxu0 0.0
    %561 = vmatprep.subr.mxu0 0.0
    %562 = vmatpush1.msra.mxu0 0.0
    %563 = vmatprep.subr.mxu0 0.0
    %564 = vmatpush1.msra.mxu0 0.0
    %565 = vmatprep.subr.mxu0 0.0
    %566 = vmatpush1.msra.mxu0 0.0
    %567 = vmatprep.subr.mxu0 0.0
    %568 = vmatpush1.msra.mxu0 0.0
    %569 = vmatprep.subr.mxu0 0.0
    %570 = vmatpush1.msra.mxu0 0.0
    %571 = vmatprep.subr.mxu0 0.0
    %572 = vmatpush1.msra.mxu0 0.0
    %573 = vmatprep.subr.mxu0 0.0
    %574 = vmatpush1.msra.mxu0 0.0
    %575 = vmatprep.subr.mxu0 0.0
    %576 = vmatpush1.msra.mxu0 0.0
    %577 = vmatprep.subr.mxu0 0.0
    %578 = vmatpush1.msra.mxu0 0.0
    %579 = vmatprep.subr.mxu0 0.0
    %580 = vmatpush1.msra.mxu0 0.0
    %581 = vmatprep.subr.mxu0 0.0
    %582 = vmatpush1.msra.mxu0 0.0
    %583 = vmatprep.subr.mxu0 0.0
    %584 = vmatpush1.msra.mxu0 0.0
    %585 = vmatprep.subr.mxu0 0.0
    %586 = vmatpush1.msra.mxu0 0.0
    %587 = vmatprep.subr.mxu0 0.0
    %588 = vmatpush1.msra.mxu0 0.0
    %589 = vmatprep.subr.mxu0 0.0
    %590 = vmatpush1.msra.mxu0 0.0
    %591 = vmatprep.subr.mxu0 0.0
    %592 = vmatpush1.msra.mxu0 0.0
    %593 = vmatprep.subr.mxu0 0.0
    %594 = vmatpush1.msra.mxu0 0.0
    %595 = vmatprep.subr.mxu0 0.0
    %596 = vmatpush1.msra.mxu0 0.0
    %597 = vmatprep.subr.mxu0 0.0
    %598 = vmatpush1.msra.mxu0 0.0
    %599 = vmatprep.subr.mxu0 0.0
    %600 = vmatpush1.msra.mxu0 0.0
    %601 = vmatprep.subr.mxu0 0.0
    %602 = vmatpush1.msra.mxu0 0.0
    %603 = vmatprep.subr.mxu0 0.0
    %604 = vmatpush1.msra.mxu0 0.0
    %605 = vmatprep.subr.mxu0 0.0
    %606 = vmatpush1.msra.mxu0 0.0
    %607 = vmatprep.subr.mxu0 0.0
    %608 = vmatpush1.msra.mxu0 0.0
    %609 = vmatprep.subr.mxu0 0.0
    %610 = vmatpush1.msra.mxu0 0.0
    %611 = vmatprep.subr.mxu0 0.0
    %612 = vmatpush1.msra.mxu0 0.0
    %613 = vmatprep.subr.mxu0 0.0
    %614 = vmatpush1.msra.mxu0 0.0
    %615 = vmatprep.subr.mxu0 0.0
    %616 = vmatpush1.msra.mxu0 0.0
    %617 = vmatprep.mubr.f32.mxu0 0.0
    %618 = vmatmul.mubr.f32.gmra.mrb[0].mxu0 %v551
    %v619 = vpop.f32.mrb[0].mxu0
    %v620 = vadd.f32 0.0, %v619
    %v621 = vpop.f32.mrb[0].mxu0
    %622 = vdwg.mxu0
    %v624 = vsel %vm375, %v549, 0
    %626 = vmatprep.subr.mxu0 0.0
    %627 = vmatpush1.msra.mxu0 %v366
    %628 = vmatprep.subr.mxu0 0.0
    %629 = vmatpush1.msra.mxu0 0.0
    %630 = vmatprep.subr.mxu0 0.0
    %631 = vmatpush1.msra.mxu0 0.0
    %632 = vmatprep.subr.mxu0 0.0
    %633 = vmatpush1.msra.mxu0 0.0
    %634 = vmatprep.subr.mxu0 0.0
    %635 = vmatpush1.msra.mxu0 0.0
    %636 = vmatprep.subr.mxu0 0.0
    %637 = vmatpush1.msra.mxu0 0.0
    %638 = vmatprep.subr.mxu0 0.0
    %639 = vmatpush1.msra.mxu0 0.0
    %640 = vmatprep.subr.mxu0 0.0
    %641 = vmatpush1.msra.mxu0 0.0
    %642 = vmatprep.subr.mxu0 0.0
    %643 = vmatpush1.msra.mxu0 0.0
    %644 = vmatprep.subr.mxu0 0.0
    %645 = vmatpush1.msra.mxu0 0.0
    %646 = vmatprep.subr.mxu0 0.0
    %647 = vmatpush1.msra.mxu0 0.0
    %648 = vmatprep.subr.mxu0 0.0
    %649 = vmatpush1.msra.mxu0 0.0
    %650 = vmatprep.subr.mxu0 0.0
    %651 = vmatpush1.msra.mxu0 0.0
    %652 = vmatprep.subr.mxu0 0.0
    %653 = vmatpush1.msra.mxu0 0.0
    %654 = vmatprep.subr.mxu0 0.0
    %655 = vmatpush1.msra.mxu0 0.0
    %656 = vmatprep.subr.mxu0 0.0
    %657 = vmatpush1.msra.mxu0 0.0
    %658 = vmatprep.subr.mxu0 0.0
    %659 = vmatpush1.msra.mxu0 0.0
    %660 = vmatprep.subr.mxu0 0.0
    %661 = vmatpush1.msra.mxu0 0.0
    %662 = vmatprep.subr.mxu0 0.0
    %663 = vmatpush1.msra.mxu0 0.0
    %664 = vmatprep.subr.mxu0 0.0
    %665 = vmatpush1.msra.mxu0 0.0
    %666 = vmatprep.subr.mxu0 0.0
    %667 = vmatpush1.msra.mxu0 0.0
    %668 = vmatprep.subr.mxu0 0.0
    %669 = vmatpush1.msra.mxu0 0.0
    %670 = vmatprep.subr.mxu0 0.0
    %671 = vmatpush1.msra.mxu0 0.0
    %672 = vmatprep.subr.mxu0 0.0
    %673 = vmatpush1.msra.mxu0 0.0
    %674 = vmatprep.subr.mxu0 0.0
    %675 = vmatpush1.msra.mxu0 0.0
    %676 = vmatprep.subr.mxu0 0.0
    %677 = vmatpush1.msra.mxu0 0.0
    %678 = vmatprep.subr.mxu0 0.0
    %679 = vmatpush1.msra.mxu0 0.0
    %680 = vmatprep.subr.mxu0 0.0
    %681 = vmatpush1.msra.mxu0 0.0
    %682 = vmatprep.subr.mxu0 0.0
    %683 = vmatpush1.msra.mxu0 0.0
    %684 = vmatprep.subr.mxu0 0.0
    %685 = vmatpush1.msra.mxu0 0.0
    %686 = vmatprep.subr.mxu0 0.0
    %687 = vmatpush1.msra.mxu0 0.0
    %688 = vmatprep.subr.mxu0 0.0
    %689 = vmatpush1.msra.mxu0 0.0
    %690 = vmatprep.mubr.f32.mxu0 0.0
    %691 = vmatmul.mubr.f32.gmra.mrb[0].mxu0 %v624
    %v692 = vpop.f32.mrb[0].mxu0
    %v693 = vadd.f32 0.0, %v692
    %v694 = vpop.f32.mrb[0].mxu0
    %695 = vdwg.mxu0
    %v696 = vld [vmem:[%s1 + $0x18] sm:$0xff]
    %697 = vrot.lane.b32.xlu0 %v199, 120
    %v698 = vpop.permute.xlu0 %697
    %699 = vrot.lane.b32.xlu0 %v280, 120
    %v700 = vpop.permute.xlu0 %699
    %v701 = vsel %vm375, %v698, 0
    %v703 = vsel %vm375, %v700, 0
    %705 = vmatprep.subr.mxu0 0.0
    %706 = vmatpush1.xpose.msra.mxu0 %v703
    %707 = vmatprep.subr.mxu0 0.0
    %708 = vmatpush1.xpose.msra.mxu0 0.0
    %709 = vmatprep.subr.mxu0 0.0
    %710 = vmatpush1.xpose.msra.mxu0 0.0
    %711 = vmatprep.subr.mxu0 0.0
    %712 = vmatpush1.xpose.msra.mxu0 0.0
    %713 = vmatprep.subr.mxu0 0.0
    %714 = vmatpush1.xpose.msra.mxu0 0.0
    %715 = vmatprep.subr.mxu0 0.0
    %716 = vmatpush1.xpose.msra.mxu0 0.0
    %717 = vmatprep.subr.mxu0 0.0
    %718 = vmatpush1.xpose.msra.mxu0 0.0
    %719 = vmatprep.subr.mxu0 0.0
    %720 = vmatpush1.xpose.msra.mxu0 0.0
    %721 = vmatprep.subr.mxu0 0.0
    %722 = vmatpush1.xpose.msra.mxu0 0.0
    %723 = vmatprep.subr.mxu0 0.0
    %724 = vmatpush1.xpose.msra.mxu0 0.0
    %725 = vmatprep.subr.mxu0 0.0
    %726 = vmatpush1.xpose.msra.mxu0 0.0
    %727 = vmatprep.subr.mxu0 0.0
    %728 = vmatpush1.xpose.msra.mxu0 0.0
    %729 = vmatprep.subr.mxu0 0.0
    %730 = vmatpush1.xpose.msra.mxu0 0.0
    %731 = vmatprep.subr.mxu0 0.0
    %732 = vmatpush1.xpose.msra.mxu0 0.0
    %733 = vmatprep.subr.mxu0 0.0
    %734 = vmatpush1.xpose.msra.mxu0 0.0
    %735 = vmatprep.subr.mxu0 0.0
    %736 = vmatpush1.xpose.msra.mxu0 0.0
    %737 = vmatprep.subr.mxu0 0.0
    %738 = vmatpush1.xpose.msra.mxu0 0.0
    %739 = vmatprep.subr.mxu0 0.0
    %740 = vmatpush1.xpose.msra.mxu0 0.0
    %741 = vmatprep.subr.mxu0 0.0
    %742 = vmatpush1.xpose.msra.mxu0 0.0
    %743 = vmatprep.subr.mxu0 0.0
    %744 = vmatpush1.xpose.msra.mxu0 0.0
    %745 = vmatprep.subr.mxu0 0.0
    %746 = vmatpush1.xpose.msra.mxu0 0.0
    %747 = vmatprep.subr.mxu0 0.0
    %748 = vmatpush1.xpose.msra.mxu0 0.0
    %749 = vmatprep.subr.mxu0 0.0
    %750 = vmatpush1.xpose.msra.mxu0 0.0
    %751 = vmatprep.subr.mxu0 0.0
    %752 = vmatpush1.xpose.msra.mxu0 0.0
    %753 = vmatprep.subr.mxu0 0.0
    %754 = vmatpush1.xpose.msra.mxu0 0.0
    %755 = vmatprep.subr.mxu0 0.0
    %756 = vmatpush1.xpose.msra.mxu0 0.0
    %757 = vmatprep.subr.mxu0 0.0
    %758 = vmatpush1.xpose.msra.mxu0 0.0
    %759 = vmatprep.subr.mxu0 0.0
    %760 = vmatpush1.xpose.msra.mxu0 0.0
    %761 = vmatprep.subr.mxu0 0.0
    %762 = vmatpush1.xpose.msra.mxu0 0.0
    %763 = vmatprep.subr.mxu0 0.0
    %764 = vmatpush1.xpose.msra.mxu0 0.0
    %765 = vmatprep.subr.mxu0 0.0
    %766 = vmatpush1.xpose.msra.mxu0 0.0
    %767 = vmatprep.subr.mxu0 0.0
    %768 = vmatpush1.xpose.msra.mxu0 0.0
    %769 = vmatprep.mubr.f32.mxu0 0.0
    %770 = vmatmul.mubr.f32.gmra.mrb[0].mxu0 %v701
    %v771 = vpop.f32.mrb[0].mxu0
    %v772 = vadd.f32 %v374, %v771
    %v773 = vpop.f32.mrb[0].mxu0
    %774 = vdwg.mxu0
    %775 = vrot.lane.b32.xlu0 %v204, 120
    %v776 = vpop.permute.xlu0 %775
    %777 = vrot.lane.b32.xlu0 %v285, 120
    %v778 = vpop.permute.xlu0 %777
    %v779 = vsel %vm375, %v776, 0
    %v781 = vsel %vm375, %v778, 0
    %783 = vmatprep.subr.mxu0 0.0
    %784 = vmatpush1.xpose.msra.mxu0 %v781
    %785 = vmatprep.subr.mxu0 0.0
    %786 = vmatpush1.xpose.msra.mxu0 0.0
    %787 = vmatprep.subr.mxu0 0.0
    %788 = vmatpush1.xpose.msra.mxu0 0.0
    %789 = vmatprep.subr.mxu0 0.0
    %790 = vmatpush1.xpose.msra.mxu0 0.0
    %791 = vmatprep.subr.mxu0 0.0
    %792 = vmatpush1.xpose.msra.mxu0 0.0
    %793 = vmatprep.subr.mxu0 0.0
    %794 = vmatpush1.xpose.msra.mxu0 0.0
    %795 = vmatprep.subr.mxu0 0.0
    %796 = vmatpush1.xpose.msra.mxu0 0.0
    %797 = vmatprep.subr.mxu0 0.0
    %798 = vmatpush1.xpose.msra.mxu0 0.0
    %799 = vmatprep.subr.mxu0 0.0
    %800 = vmatpush1.xpose.msra.mxu0 0.0
    %801 = vmatprep.subr.mxu0 0.0
    %802 = vmatpush1.xpose.msra.mxu0 0.0
    %803 = vmatprep.subr.mxu0 0.0
    %804 = vmatpush1.xpose.msra.mxu0 0.0
    %805 = vmatprep.subr.mxu0 0.0
    %806 = vmatpush1.xpose.msra.mxu0 0.0
    %807 = vmatprep.subr.mxu0 0.0
    %808 = vmatpush1.xpose.msra.mxu0 0.0
    %809 = vmatprep.subr.mxu0 0.0
    %810 = vmatpush1.xpose.msra.mxu0 0.0
    %811 = vmatprep.subr.mxu0 0.0
    %812 = vmatpush1.xpose.msra.mxu0 0.0
    %813 = vmatprep.subr.mxu0 0.0
    %814 = vmatpush1.xpose.msra.mxu0 0.0
    %815 = vmatprep.subr.mxu0 0.0
    %816 = vmatpush1.xpose.msra.mxu0 0.0
    %817 = vmatprep.subr.mxu0 0.0
    %818 = vmatpush1.xpose.msra.mxu0 0.0
    %819 = vmatprep.subr.mxu0 0.0
    %820 = vmatpush1.xpose.msra.mxu0 0.0
    %821 = vmatprep.subr.mxu0 0.0
    %822 = vmatpush1.xpose.msra.mxu0 0.0
    %823 = vmatprep.subr.mxu0 0.0
    %824 = vmatpush1.xpose.msra.mxu0 0.0
    %825 = vmatprep.subr.mxu0 0.0
    %826 = vmatpush1.xpose.msra.mxu0 0.0
    %827 = vmatprep.subr.mxu0 0.0
    %828 = vmatpush1.xpose.msra.mxu0 0.0
    %829 = vmatprep.subr.mxu0 0.0
    %830 = vmatpush1.xpose.msra.mxu0 0.0
    %831 = vmatprep.subr.mxu0 0.0
    %832 = vmatpush1.xpose.msra.mxu0 0.0
    %833 = vmatprep.subr.mxu0 0.0
    %834 = vmatpush1.xpose.msra.mxu0 0.0
    %835 = vmatprep.subr.mxu0 0.0
    %836 = vmatpush1.xpose.msra.mxu0 0.0
    %837 = vmatprep.subr.mxu0 0.0
    %838 = vmatpush1.xpose.msra.mxu0 0.0
    %839 = vmatprep.subr.mxu0 0.0
    %840 = vmatpush1.xpose.msra.mxu0 0.0
    %841 = vmatprep.subr.mxu0 0.0
    %842 = vmatpush1.xpose.msra.mxu0 0.0
    %843 = vmatprep.subr.mxu0 0.0
    %844 = vmatpush1.xpose.msra.mxu0 0.0
    %845 = vmatprep.subr.mxu0 0.0
    %846 = vmatpush1.xpose.msra.mxu0 0.0
    %847 = vmatprep.mubr.f32.mxu0 0.0
    %848 = vmatmul.mubr.f32.gmra.mrb[0].mxu0 %v779
    %v849 = vpop.f32.mrb[0].mxu0
    %v850 = vadd.f32 %v374, %v849
    %v851 = vpop.f32.mrb[0].mxu0
    %852 = vdwg.mxu0
    %v853 = vsel %vm375, %v772, -inf
    %854 = vmax.xlane.f32.xlu0 %v853
    %v855 = vpop.xlane.xlu0 %854
    %v856 = vsel %vm375, %v850, -inf
    %857 = vmax.xlane.f32.xlu0 %v856
    %v858 = vpop.xlane.xlu0 %857
    %v859 = vsub.f32 %v772, %v855
    %v860 = vsub.f32 %v850, %v858
    %v861 = vmul.f32 %v859, 1.442695
    %v862 = vpow.pop %v861
    %v863 = vmul.f32 %v860, 1.442695
    %v864 = vpow.pop %v863
    %v865 = vsel %vm375, %v862, 0.0
    %866 = vadd.xlane.f32.xlu0 %v865
    %v867 = vpop.xlane.xlu0 %866
    %v868 = vsel %vm375, %v864, 0.0
    %869 = vadd.xlane.f32.xlu0 %v868
    %v870 = vpop.xlane.xlu0 %869
    %v871 = vrcp.pop %v867
    %v872 = vrcp.pop %v870
    %v873 = vmul.f32 %v862, %v871
    %v874 = vmul.f32 %v864, %v872
    %876 = vrot.lane.b32.xlu0 %v361, 120
    %v877 = vpop.permute.xlu0 %876
    %v880 = vsel %vm375, %v873, 0
    %882 = vmatprep.subr.mxu0 0.0
    %883 = vmatpush1.msra.mxu0 %v877
    %884 = vmatprep.subr.mxu0 0.0
    %885 = vmatpush1.msra.mxu0 0.0
    %886 = vmatprep.subr.mxu0 0.0
    %887 = vmatpush1.msra.mxu0 0.0
    %888 = vmatprep.subr.mxu0 0.0
    %889 = vmatpush1.msra.mxu0 0.0
    %890 = vmatprep.subr.mxu0 0.0
    %891 = vmatpush1.msra.mxu0 0.0
    %892 = vmatprep.subr.mxu0 0.0
    %893 = vmatpush1.msra.mxu0 0.0
    %894 = vmatprep.subr.mxu0 0.0
    %895 = vmatpush1.msra.mxu0 0.0
    %896 = vmatprep.subr.mxu0 0.0
    %897 = vmatpush1.msra.mxu0 0.0
    %898 = vmatprep.subr.mxu0 0.0
    %899 = vmatpush1.msra.mxu0 0.0
    %900 = vmatprep.subr.mxu0 0.0
    %901 = vmatpush1.msra.mxu0 0.0
    %902 = vmatprep.subr.mxu0 0.0
    %903 = vmatpush1.msra.mxu0 0.0
    %904 = vmatprep.subr.mxu0 0.0
    %905 = vmatpush1.msra.mxu0 0.0
    %906 = vmatprep.subr.mxu0 0.0
    %907 = vmatpush1.msra.mxu0 0.0
    %908 = vmatprep.subr.mxu0 0.0
    %909 = vmatpush1.msra.mxu0 0.0
    %910 = vmatprep.subr.mxu0 0.0
    %911 = vmatpush1.msra.mxu0 0.0
    %912 = vmatprep.subr.mxu0 0.0
    %913 = vmatpush1.msra.mxu0 0.0
    %914 = vmatprep.subr.mxu0 0.0
    %915 = vmatpush1.msra.mxu0 0.0
    %916 = vmatprep.subr.mxu0 0.0
    %917 = vmatpush1.msra.mxu0 0.0
    %918 = vmatprep.subr.mxu0 0.0
    %919 = vmatpush1.msra.mxu0 0.0
    %920 = vmatprep.subr.mxu0 0.0
    %921 = vmatpush1.msra.mxu0 0.0
    %922 = vmatprep.subr.mxu0 0.0
    %923 = vmatpush1.msra.mxu0 0.0
    %924 = vmatprep.subr.mxu0 0.0
    %925 = vmatpush1.msra.mxu0 0.0
    %926 = vmatprep.subr.mxu0 0.0
    %927 = vmatpush1.msra.mxu0 0.0
    %928 = vmatprep.subr.mxu0 0.0
    %929 = vmatpush1.msra.mxu0 0.0
    %930 = vmatprep.subr.mxu0 0.0
    %931 = vmatpush1.msra.mxu0 0.0
    %932 = vmatprep.subr.mxu0 0.0
    %933 = vmatpush1.msra.mxu0 0.0
    %934 = vmatprep.subr.mxu0 0.0
    %935 = vmatpush1.msra.mxu0 0.0
    %936 = vmatprep.subr.mxu0 0.0
    %937 = vmatpush1.msra.mxu0 0.0
    %938 = vmatprep.subr.mxu0 0.0
    %939 = vmatpush1.msra.mxu0 0.0
    %940 = vmatprep.subr.mxu0 0.0
    %941 = vmatpush1.msra.mxu0 0.0
    %942 = vmatprep.subr.mxu0 0.0
    %943 = vmatpush1.msra.mxu0 0.0
    %944 = vmatprep.subr.mxu0 0.0
    %945 = vmatpush1.msra.mxu0 0.0
    %946 = vmatprep.mubr.f32.mxu0 0.0
    %947 = vmatmul.mubr.f32.gmra.mrb[0].mxu0 %v880
    %v948 = vpop.f32.mrb[0].mxu0
    %v949 = vadd.f32 0.0, %v948
    %v950 = vpop.f32.mrb[0].mxu0
    %951 = vdwg.mxu0
    %953 = vrot.lane.b32.xlu0 %v366, 120
    %v954 = vpop.permute.xlu0 %953
    %v957 = vsel %vm375, %v874, 0
    %959 = vmatprep.subr.mxu0 0.0
    %960 = vmatpush1.msra.mxu0 %v954
    %961 = vmatprep.subr.mxu0 0.0
    %962 = vmatpush1.msra.mxu0 0.0
    %963 = vmatprep.subr.mxu0 0.0
    %964 = vmatpush1.msra.mxu0 0.0
    %965 = vmatprep.subr.mxu0 0.0
    %966 = vmatpush1.msra.mxu0 0.0
    %967 = vmatprep.subr.mxu0 0.0
    %968 = vmatpush1.msra.mxu0 0.0
    %969 = vmatprep.subr.mxu0 0.0
    %970 = vmatpush1.msra.mxu0 0.0
    %971 = vmatprep.subr.mxu0 0.0
    %972 = vmatpush1.msra.mxu0 0.0
    %973 = vmatprep.subr.mxu0 0.0
    %974 = vmatpush1.msra.mxu0 0.0
    %975 = vmatprep.subr.mxu0 0.0
    %976 = vmatpush1.msra.mxu0 0.0
    %977 = vmatprep.subr.mxu0 0.0
    %978 = vmatpush1.msra.mxu0 0.0
    %979 = vmatprep.subr.mxu0 0.0
    %980 = vmatpush1.msra.mxu0 0.0
    %981 = vmatprep.subr.mxu0 0.0
    %982 = vmatpush1.msra.mxu0 0.0
    %983 = vmatprep.subr.mxu0 0.0
    %984 = vmatpush1.msra.mxu0 0.0
    %985 = vmatprep.subr.mxu0 0.0
    %986 = vmatpush1.msra.mxu0 0.0
    %987 = vmatprep.subr.mxu0 0.0
    %988 = vmatpush1.msra.mxu0 0.0
    %989 = vmatprep.subr.mxu0 0.0
    %990 = vmatpush1.msra.mxu0 0.0
    %991 = vmatprep.subr.mxu0 0.0
    %992 = vmatpush1.msra.mxu0 0.0
    %993 = vmatprep.subr.mxu0 0.0
    %994 = vmatpush1.msra.mxu0 0.0
    %995 = vmatprep.subr.mxu0 0.0
    %996 = vmatpush1.msra.mxu0 0.0
    %997 = vmatprep.subr.mxu0 0.0
    %998 = vmatpush1.msra.mxu0 0.0
    %999 = vmatprep.subr.mxu0 0.0
    %1000 = vmatpush1.msra.mxu0 0.0
    %1001 = vmatprep.subr.mxu0 0.0
    %1002 = vmatpush1.msra.mxu0 0.0
    %1003 = vmatprep.subr.mxu0 0.0
    %1004 = vmatpush1.msra.mxu0 0.0
    %1005 = vmatprep.subr.mxu0 0.0
    %1006 = vmatpush1.msra.mxu0 0.0
    %1007 = vmatprep.subr.mxu0 0.0
    %1008 = vmatpush1.msra.mxu0 0.0
    %1009 = vmatprep.subr.mxu0 0.0
    %1010 = vmatpush1.msra.mxu0 0.0
    %1011 = vmatprep.subr.mxu0 0.0
    %1012 = vmatpush1.msra.mxu0 0.0
    %1013 = vmatprep.subr.mxu0 0.0
    %1014 = vmatpush1.msra.mxu0 0.0
    %1015 = vmatprep.subr.mxu0 0.0
    %1016 = vmatpush1.msra.mxu0 0.0
    %1017 = vmatprep.subr.mxu0 0.0
    %1018 = vmatpush1.msra.mxu0 0.0
    %1019 = vmatprep.subr.mxu0 0.0
    %1020 = vmatpush1.msra.mxu0 0.0
    %1021 = vmatprep.subr.mxu0 0.0
    %1022 = vmatpush1.msra.mxu0 0.0
    %1023 = vmatprep.mubr.f32.mxu0 0.0
    %1024 = vmatmul.mubr.f32.gmra.mrb[0].mxu0 %v957
    %v1025 = vpop.f32.mrb[0].mxu0
    %v1026 = vadd.f32 0.0, %v1025
    %v1027 = vpop.f32.mrb[0].mxu0
    %1028 = vdwg.mxu0
    %v1029 = vld [vmem:[%s1 + $0x40] sm:$0xff]
    %v1031 = vsel %vm375, %v949, 0
    %v1034 = vsel %vm375, %v1026, 0
    %1036 = vmatprep.subr.mxu0 0.0
    %1037 = vmatpush1.msra.mxu0 %v1029
    %1038 = vmatprep.subr.mxu0 0.0
    %1039 = vmatpush1.msra.mxu0 0.0
    %1040 = vmatprep.subr.mxu0 0.0
    %1041 = vmatpush1.msra.mxu0 0.0
    %1042 = vmatprep.subr.mxu0 0.0
    %1043 = vmatpush1.msra.mxu0 0.0
    %1044 = vmatprep.subr.mxu0 0.0
    %1045 = vmatpush1.msra.mxu0 0.0
    %1046 = vmatprep.subr.mxu0 0.0
    %1047 = vmatpush1.msra.mxu0 0.0
    %1048 = vmatprep.subr.mxu0 0.0
    %1049 = vmatpush1.msra.mxu0 0.0
    %1050 = vmatprep.subr.mxu0 0.0
    %1051 = vmatpush1.msra.mxu0 0.0
    %1052 = vmatprep.subr.mxu0 0.0
    %1053 = vmatpush1.msra.mxu0 0.0
    %1054 = vmatprep.subr.mxu0 0.0
    %1055 = vmatpush1.msra.mxu0 0.0
    %1056 = vmatprep.subr.mxu0 0.0
    %1057 = vmatpush1.msra.mxu0 0.0
    %1058 = vmatprep.subr.mxu0 0.0
    %1059 = vmatpush1.msra.mxu0 0.0
    %1060 = vmatprep.subr.mxu0 0.0
    %1061 = vmatpush1.msra.mxu0 0.0
    %1062 = vmatprep.subr.mxu0 0.0
    %1063 = vmatpush1.msra.mxu0 0.0
    %1064 = vmatprep.subr.mxu0 0.0
    %1065 = vmatpush1.msra.mxu0 0.0
    %1066 = vmatprep.subr.mxu0 0.0
    %1067 = vmatpush1.msra.mxu0 0.0
    %1068 = vmatprep.subr.mxu0 0.0
    %1069 = vmatpush1.msra.mxu0 0.0
    %1070 = vmatprep.subr.mxu0 0.0
    %1071 = vmatpush1.msra.mxu0 0.0
    %1072 = vmatprep.subr.mxu0 0.0
    %1073 = vmatpush1.msra.mxu0 0.0
    %1074 = vmatprep.subr.mxu0 0.0
    %1075 = vmatpush1.msra.mxu0 0.0
    %1076 = vmatprep.subr.mxu0 0.0
    %1077 = vmatpush1.msra.mxu0 0.0
    %1078 = vmatprep.subr.mxu0 0.0
    %1079 = vmatpush1.msra.mxu0 0.0
    %1080 = vmatprep.subr.mxu0 0.0
    %1081 = vmatpush1.msra.mxu0 0.0
    %1082 = vmatprep.subr.mxu0 0.0
    %1083 = vmatpush1.msra.mxu0 0.0
    %1084 = vmatprep.subr.mxu0 0.0
    %1085 = vmatpush1.msra.mxu0 0.0
    %1086 = vmatprep.subr.mxu0 0.0
    %1087 = vmatpush1.msra.mxu0 0.0
    %1088 = vmatprep.subr.mxu0 0.0
    %1089 = vmatpush1.msra.mxu0 0.0
    %1090 = vmatprep.subr.mxu0 0.0
    %1091 = vmatpush1.msra.mxu0 0.0
    %1092 = vmatprep.subr.mxu0 0.0
    %1093 = vmatpush1.msra.mxu0 0.0
    %1094 = vmatprep.subr.mxu0 0.0
    %1095 = vmatpush1.msra.mxu0 0.0
    %1096 = vmatprep.subr.mxu0 0.0
    %1097 = vmatpush1.msra.mxu0 0.0
    %1098 = vmatprep.subr.mxu0 0.0
    %1099 = vmatpush1.msra.mxu0 0.0
    %1100 = vmatprep.mubr.f32.mxu0 0.0
    %1101 = vmatmul.mubr.f32.gmra.mrb[0].mxu0 %v1031
    %v1102 = vpop.f32.mrb[0].mxu0
    %v1103 = vadd.f32 0.0, %v1102
    %v1104 = vpop.f32.mrb[0].mxu0
    %1105 = vmatprep.mubr.f32.mxu0 0.0
    %1106 = vmatmul.mubr.f32.gmra.mrb[0].mxu0 %v1034
    %v1107 = vpop.f32.mrb[0].mxu0
    %v1108 = vadd.f32 0.0, %v1107
    %v1109 = vpop.f32.mrb[0].mxu0
    %1110 = vdwg.mxu0
    %v1112 = vsel %vm375, %v620, 0
    %v1115 = vsel %vm375, %v693, 0
    %1117 = vmatprep.subr.mxu0 0.0
    %1118 = vmatpush1.msra.mxu0 %v696
    %1119 = vmatprep.subr.mxu0 0.0
    %1120 = vmatpush1.msra.mxu0 0.0
    %1121 = vmatprep.subr.mxu0 0.0
    %1122 = vmatpush1.msra.mxu0 0.0
    %1123 = vmatprep.subr.mxu0 0.0
    %1124 = vmatpush1.msra.mxu0 0.0
    %1125 = vmatprep.subr.mxu0 0.0
    %1126 = vmatpush1.msra.mxu0 0.0
    %1127 = vmatprep.subr.mxu0 0.0
    %1128 = vmatpush1.msra.mxu0 0.0
    %1129 = vmatprep.subr.mxu0 0.0
    %1130 = vmatpush1.msra.mxu0 0.0
    %1131 = vmatprep.subr.mxu0 0.0
    %1132 = vmatpush1.msra.mxu0 0.0
    %1133 = vmatprep.subr.mxu0 0.0
    %1134 = vmatpush1.msra.mxu0 0.0
    %1135 = vmatprep.subr.mxu0 0.0
    %1136 = vmatpush1.msra.mxu0 0.0
    %1137 = vmatprep.subr.mxu0 0.0
    %1138 = vmatpush1.msra.mxu0 0.0
    %1139 = vmatprep.subr.mxu0 0.0
    %1140 = vmatpush1.msra.mxu0 0.0
    %1141 = vmatprep.subr.mxu0 0.0
    %1142 = vmatpush1.msra.mxu0 0.0
    %1143 = vmatprep.subr.mxu0 0.0
    %1144 = vmatpush1.msra.mxu0 0.0
    %1145 = vmatprep.subr.mxu0 0.0
    %1146 = vmatpush1.msra.mxu0 0.0
    %1147 = vmatprep.subr.mxu0 0.0
    %1148 = vmatpush1.msra.mxu0 0.0
    %1149 = vmatprep.subr.mxu0 0.0
    %1150 = vmatpush1.msra.mxu0 0.0
    %1151 = vmatprep.subr.mxu0 0.0
    %1152 = vmatpush1.msra.mxu0 0.0
    %1153 = vmatprep.subr.mxu0 0.0
    %1154 = vmatpush1.msra.mxu0 0.0
    %1155 = vmatprep.subr.mxu0 0.0
    %1156 = vmatpush1.msra.mxu0 0.0
    %1157 = vmatprep.subr.mxu0 0.0
    %1158 = vmatpush1.msra.mxu0 0.0
    %1159 = vmatprep.subr.mxu0 0.0
    %1160 = vmatpush1.msra.mxu0 0.0
    %1161 = vmatprep.subr.mxu0 0.0
    %1162 = vmatpush1.msra.mxu0 0.0
    %1163 = vmatprep.subr.mxu0 0.0
    %1164 = vmatpush1.msra.mxu0 0.0
    %1165 = vmatprep.subr.mxu0 0.0
    %1166 = vmatpush1.msra.mxu0 0.0
    %1167 = vmatprep.subr.mxu0 0.0
    %1168 = vmatpush1.msra.mxu0 0.0
    %1169 = vmatprep.subr.mxu0 0.0
    %1170 = vmatpush1.msra.mxu0 0.0
    %1171 = vmatprep.subr.mxu0 0.0
    %1172 = vmatpush1.msra.mxu0 0.0
    %1173 = vmatprep.subr.mxu0 0.0
    %1174 = vmatpush1.msra.mxu0 0.0
    %1175 = vmatprep.subr.mxu0 0.0
    %1176 = vmatpush1.msra.mxu0 0.0
    %1177 = vmatprep.subr.mxu0 0.0
    %1178 = vmatpush1.msra.mxu0 0.0
    %1179 = vmatprep.subr.mxu0 0.0
    %1180 = vmatpush1.msra.mxu0 0.0
    %1181 = vmatprep.mubr.f32.mxu0 0.0
    %1182 = vmatmul.mubr.f32.gmra.mrb[0].mxu0 %v1112
    %v1183 = vpop.f32.mrb[0].mxu0
    %v1184 = vadd.f32 %v1103, %v1183
    %v1185 = vpop.f32.mrb[0].mxu0
    %1186 = vmatprep.mubr.f32.mxu0 0.0
    %1187 = vmatmul.mubr.f32.gmra.mrb[0].mxu0 %v1115
    %v1188 = vpop.f32.mrb[0].mxu0
    %v1189 = vadd.f32 %v1108, %v1188
    %v1190 = vpop.f32.mrb[0].mxu0
    %1191 = vdwg.mxu0
    %1192 = vrot.lane.b32.xlu0 %v199, 112
    %v1193 = vpop.permute.xlu0 %1192
    %1194 = vrot.lane.b32.xlu0 %v280, 112
    %v1195 = vpop.permute.xlu0 %1194
    %v1196 = vsel %vm375, %v1193, 0
    %v1198 = vsel %vm375, %v1195, 0
    %1200 = vmatprep.subr.mxu0 0.0
    %1201 = vmatpush1.xpose.msra.mxu0 %v1198
    %1202 = vmatprep.subr.mxu0 0.0
    %1203 = vmatpush1.xpose.msra.mxu0 0.0
    %1204 = vmatprep.subr.mxu0 0.0
    %1205 = vmatpush1.xpose.msra.mxu0 0.0
    %1206 = vmatprep.subr.mxu0 0.0
    %1207 = vmatpush1.xpose.msra.mxu0 0.0
    %1208 = vmatprep.subr.mxu0 0.0
    %1209 = vmatpush1.xpose.msra.mxu0 0.0
    %1210 = vmatprep.subr.mxu0 0.0
    %1211 = vmatpush1.xpose.msra.mxu0 0.0
    %1212 = vmatprep.subr.mxu0 0.0
    %1213 = vmatpush1.xpose.msra.mxu0 0.0
    %1214 = vmatprep.subr.mxu0 0.0
    %1215 = vmatpush1.xpose.msra.mxu0 0.0
    %1216 = vmatprep.subr.mxu0 0.0
    %1217 = vmatpush1.xpose.msra.mxu0 0.0
    %1218 = vmatprep.subr.mxu0 0.0
    %1219 = vmatpush1.xpose.msra.mxu0 0.0
    %1220 = vmatprep.subr.mxu0 0.0
    %1221 = vmatpush1.xpose.msra.mxu0 0.0
    %1222 = vmatprep.subr.mxu0 0.0
    %1223 = vmatpush1.xpose.msra.mxu0 0.0
    %1224 = vmatprep.subr.mxu0 0.0
    %1225 = vmatpush1.xpose.msra.mxu0 0.0
    %1226 = vmatprep.subr.mxu0 0.0
    %1227 = vmatpush1.xpose.msra.mxu0 0.0
    %1228 = vmatprep.subr.mxu0 0.0
    %1229 = vmatpush1.xpose.msra.mxu0 0.0
    %1230 = vmatprep.subr.mxu0 0.0
    %1231 = vmatpush1.xpose.msra.mxu0 0.0
    %1232 = vmatprep.subr.mxu0 0.0
    %1233 = vmatpush1.xpose.msra.mxu0 0.0
    %1234 = vmatprep.subr.mxu0 0.0
    %1235 = vmatpush1.xpose.msra.mxu0 0.0
    %1236 = vmatprep.subr.mxu0 0.0
    %1237 = vmatpush1.xpose.msra.mxu0 0.0
    %1238 = vmatprep.subr.mxu0 0.0
    %1239 = vmatpush1.xpose.msra.mxu0 0.0
    %1240 = vmatprep.subr.mxu0 0.0
    %1241 = vmatpush1.xpose.msra.mxu0 0.0
    %1242 = vmatprep.subr.mxu0 0.0
    %1243 = vmatpush1.xpose.msra.mxu0 0.0
    %1244 = vmatprep.subr.mxu0 0.0
    %1245 = vmatpush1.xpose.msra.mxu0 0.0
    %1246 = vmatprep.subr.mxu0 0.0
    %1247 = vmatpush1.xpose.msra.mxu0 0.0
    %1248 = vmatprep.subr.mxu0 0.0
    %1249 = vmatpush1.xpose.msra.mxu0 0.0
    %1250 = vmatprep.subr.mxu0 0.0
    %1251 = vmatpush1.xpose.msra.mxu0 0.0
    %1252 = vmatprep.subr.mxu0 0.0
    %1253 = vmatpush1.xpose.msra.mxu0 0.0
    %1254 = vmatprep.subr.mxu0 0.0
    %1255 = vmatpush1.xpose.msra.mxu0 0.0
    %1256 = vmatprep.subr.mxu0 0.0
    %1257 = vmatpush1.xpose.msra.mxu0 0.0
    %1258 = vmatprep.subr.mxu0 0.0
    %1259 = vmatpush1.xpose.msra.mxu0 0.0
    %1260 = vmatprep.subr.mxu0 0.0
    %1261 = vmatpush1.xpose.msra.mxu0 0.0
    %1262 = vmatprep.subr.mxu0 0.0
    %1263 = vmatpush1.xpose.msra.mxu0 0.0
    %1264 = vmatprep.mubr.f32.mxu0 0.0
    %1265 = vmatmul.mubr.f32.gmra.mrb[0].mxu0 %v1196
    %v1266 = vpop.f32.mrb[0].mxu0
    %v1267 = vadd.f32 %v374, %v1266
    %v1268 = vpop.f32.mrb[0].mxu0
    %1269 = vdwg.mxu0
    %1270 = vrot.lane.b32.xlu0 %v204, 112
    %v1271 = vpop.permute.xlu0 %1270
    %1272 = vrot.lane.b32.xlu0 %v285, 112
    %v1273 = vpop.permute.xlu0 %1272
    %v1274 = vsel %vm375, %v1271, 0
    %v1276 = vsel %vm375, %v1273, 0
    %1278 = vmatprep.subr.mxu0 0.0
    %1279 = vmatpush1.xpose.msra.mxu0 %v1276
    %1280 = vmatprep.subr.mxu0 0.0
    %1281 = vmatpush1.xpose.msra.mxu0 0.0
    %1282 = vmatprep.subr.mxu0 0.0
    %1283 = vmatpush1.xpose.msra.mxu0 0.0
    %1284 = vmatprep.subr.mxu0 0.0
    %1285 = vmatpush1.xpose.msra.mxu0 0.0
    %1286 = vmatprep.subr.mxu0 0.0
    %1287 = vmatpush1.xpose.msra.mxu0 0.0
    %1288 = vmatprep.subr.mxu0 0.0
    %1289 = vmatpush1.xpose.msra.mxu0 0.0
    %1290 = vmatprep.subr.mxu0 0.0
    %1291 = vmatpush1.xpose.msra.mxu0 0.0
    %1292 = vmatprep.subr.mxu0 0.0
    %1293 = vmatpush1.xpose.msra.mxu0 0.0
    %1294 = vmatprep.subr.mxu0 0.0
    %1295 = vmatpush1.xpose.msra.mxu0 0.0
    %1296 = vmatprep.subr.mxu0 0.0
    %1297 = vmatpush1.xpose.msra.mxu0 0.0
    %1298 = vmatprep.subr.mxu0 0.0
    %1299 = vmatpush1.xpose.msra.mxu0 0.0
    %1300 = vmatprep.subr.mxu0 0.0
    %1301 = vmatpush1.xpose.msra.mxu0 0.0
    %1302 = vmatprep.subr.mxu0 0.0
    %1303 = vmatpush1.xpose.msra.mxu0 0.0
    %1304 = vmatprep.subr.mxu0 0.0
    %1305 = vmatpush1.xpose.msra.mxu0 0.0
    %1306 = vmatprep.subr.mxu0 0.0
    %1307 = vmatpush1.xpose.msra.mxu0 0.0
    %1308 = vmatprep.subr.mxu0 0.0
    %1309 = vmatpush1.xpose.msra.mxu0 0.0
    %1310 = vmatprep.subr.mxu0 0.0
    %1311 = vmatpush1.xpose.msra.mxu0 0.0
    %1312 = vmatprep.subr.mxu0 0.0
    %1313 = vmatpush1.xpose.msra.mxu0 0.0
    %1314 = vmatprep.subr.mxu0 0.0
    %1315 = vmatpush1.xpose.msra.mxu0 0.0
    %1316 = vmatprep.subr.mxu0 0.0
    %1317 = vmatpush1.xpose.msra.mxu0 0.0
    %1318 = vmatprep.subr.mxu0 0.0
    %1319 = vmatpush1.xpose.msra.mxu0 0.0
    %1320 = vmatprep.subr.mxu0 0.0
    %1321 = vmatpush1.xpose.msra.mxu0 0.0
    %1322 = vmatprep.subr.mxu0 0.0
    %1323 = vmatpush1.xpose.msra.mxu0 0.0
    %1324 = vmatprep.subr.mxu0 0.0
    %1325 = vmatpush1.xpose.msra.mxu0 0.0
    %1326 = vmatprep.subr.mxu0 0.0
    %1327 = vmatpush1.xpose.msra.mxu0 0.0
    %1328 = vmatprep.subr.mxu0 0.0
    %1329 = vmatpush1.xpose.msra.mxu0 0.0
    %1330 = vmatprep.subr.mxu0 0.0
    %1331 = vmatpush1.xpose.msra.mxu0 0.0
    %1332 = vmatprep.subr.mxu0 0.0
    %1333 = vmatpush1.xpose.msra.mxu0 0.0
    %1334 = vmatprep.subr.mxu0 0.0
    %1335 = vmatpush1.xpose.msra.mxu0 0.0
    %1336 = vmatprep.subr.mxu0 0.0
    %1337 = vmatpush1.xpose.msra.mxu0 0.0
    %1338 = vmatprep.subr.mxu0 0.0
    %1339 = vmatpush1.xpose.msra.mxu0 0.0
    %1340 = vmatprep.subr.mxu0 0.0
    %1341 = vmatpush1.xpose.msra.mxu0 0.0
    %1342 = vmatprep.mubr.f32.mxu0 0.0
    %1343 = vmatmul.mubr.f32.gmra.mrb[0].mxu0 %v1274
    %v1344 = vpop.f32.mrb[0].mxu0
    %v1345 = vadd.f32 %v374, %v1344
    %v1346 = vpop.f32.mrb[0].mxu0
    %1347 = vdwg.mxu0
    %v1348 = vsel %vm375, %v1267, -inf
    %1349 = vmax.xlane.f32.xlu0 %v1348
    %v1350 = vpop.xlane.xlu0 %1349
    %v1351 = vsel %vm375, %v1345, -inf
    %1352 = vmax.xlane.f32.xlu0 %v1351
    %v1353 = vpop.xlane.xlu0 %1352
    %v1354 = vsub.f32 %v1267, %v1350
    %v1355 = vsub.f32 %v1345, %v1353
    %v1356 = vmul.f32 %v1354, 1.442695
    %v1357 = vpow.pop %v1356
    %v1358 = vmul.f32 %v1355, 1.442695
    %v1359 = vpow.pop %v1358
    %v1360 = vsel %vm375, %v1357, 0.0
    %1361 = vadd.xlane.f32.xlu0 %v1360
    %v1362 = vpop.xlane.xlu0 %1361
    %v1363 = vsel %vm375, %v1359, 0.0
    %1364 = vadd.xlane.f32.xlu0 %v1363
    %v1365 = vpop.xlane.xlu0 %1364
    %v1366 = vrcp.pop %v1362
    %v1367 = vrcp.pop %v1365
    %v1368 = vmul.f32 %v1357, %v1366
    %v1369 = vmul.f32 %v1359, %v1367
    %1370 = vrot.lane.b32.xlu0 %v361, 112
    %v1371 = vpop.permute.xlu0 %1370
    %v1374 = vsel %vm375, %v1368, 0
    %1376 = vmatprep.subr.mxu0 0.0
    %1377 = vmatpush1.msra.mxu0 %v1371
    %1378 = vmatprep.subr.mxu0 0.0
    %1379 = vmatpush1.msra.mxu0 0.0
    %1380 = vmatprep.subr.mxu0 0.0
    %1381 = vmatpush1.msra.mxu0 0.0
    %1382 = vmatprep.subr.mxu0 0.0
    %1383 = vmatpush1.msra.mxu0 0.0
    %1384 = vmatprep.subr.mxu0 0.0
    %1385 = vmatpush1.msra.mxu0 0.0
    %1386 = vmatprep.subr.mxu0 0.0
    %1387 = vmatpush1.msra.mxu0 0.0
    %1388 = vmatprep.subr.mxu0 0.0
    %1389 = vmatpush1.msra.mxu0 0.0
    %1390 = vmatprep.subr.mxu0 0.0
    %1391 = vmatpush1.msra.mxu0 0.0
    %1392 = vmatprep.subr.mxu0 0.0
    %1393 = vmatpush1.msra.mxu0 0.0
    %1394 = vmatprep.subr.mxu0 0.0
    %1395 = vmatpush1.msra.mxu0 0.0
    %1396 = vmatprep.subr.mxu0 0.0
    %1397 = vmatpush1.msra.mxu0 0.0
    %1398 = vmatprep.subr.mxu0 0.0
    %1399 = vmatpush1.msra.mxu0 0.0
    %1400 = vmatprep.subr.mxu0 0.0
    %1401 = vmatpush1.msra.mxu0 0.0
    %1402 = vmatprep.subr.mxu0 0.0
    %1403 = vmatpush1.msra.mxu0 0.0
    %1404 = vmatprep.subr.mxu0 0.0
    %1405 = vmatpush1.msra.mxu0 0.0
    %1406 = vmatprep.subr.mxu0 0.0
    %1407 = vmatpush1.msra.mxu0 0.0
    %1408 = vmatprep.subr.mxu0 0.0
    %1409 = vmatpush1.msra.mxu0 0.0
    %1410 = vmatprep.subr.mxu0 0.0
    %1411 = vmatpush1.msra.mxu0 0.0
    %1412 = vmatprep.subr.mxu0 0.0
    %1413 = vmatpush1.msra.mxu0 0.0
    %1414 = vmatprep.subr.mxu0 0.0
    %1415 = vmatpush1.msra.mxu0 0.0
    %1416 = vmatprep.subr.mxu0 0.0
    %1417 = vmatpush1.msra.mxu0 0.0
    %1418 = vmatprep.subr.mxu0 0.0
    %1419 = vmatpush1.msra.mxu0 0.0
    %1420 = vmatprep.subr.mxu0 0.0
    %1421 = vmatpush1.msra.mxu0 0.0
    %1422 = vmatprep.subr.mxu0 0.0
    %1423 = vmatpush1.msra.mxu0 0.0
    %1424 = vmatprep.subr.mxu0 0.0
    %1425 = vmatpush1.msra.mxu0 0.0
    %1426 = vmatprep.subr.mxu0 0.0
    %1427 = vmatpush1.msra.mxu0 0.0
    %1428 = vmatprep.subr.mxu0 0.0
    %1429 = vmatpush1.msra.mxu0 0.0
    %1430 = vmatprep.subr.mxu0 0.0
    %1431 = vmatpush1.msra.mxu0 0.0
    %1432 = vmatprep.subr.mxu0 0.0
    %1433 = vmatpush1.msra.mxu0 0.0
    %1434 = vmatprep.subr.mxu0 0.0
    %1435 = vmatpush1.msra.mxu0 0.0
    %1436 = vmatprep.subr.mxu0 0.0
    %1437 = vmatpush1.msra.mxu0 0.0
    %1438 = vmatprep.subr.mxu0 0.0
    %1439 = vmatpush1.msra.mxu0 0.0
    %1440 = vmatprep.mubr.f32.mxu0 0.0
    %1441 = vmatmul.mubr.f32.gmra.mrb[0].mxu0 %v1374
    %v1442 = vpop.f32.mrb[0].mxu0
    %v1443 = vadd.f32 0.0, %v1442
    %v1444 = vpop.f32.mrb[0].mxu0
    %1445 = vdwg.mxu0
    %1446 = vrot.lane.b32.xlu0 %v366, 112
    %v1447 = vpop.permute.xlu0 %1446
    %v1450 = vsel %vm375, %v1369, 0
    %1452 = vmatprep.subr.mxu0 0.0
    %1453 = vmatpush1.msra.mxu0 %v1447
    %1454 = vmatprep.subr.mxu0 0.0
    %1455 = vmatpush1.msra.mxu0 0.0
    %1456 = vmatprep.subr.mxu0 0.0
    %1457 = vmatpush1.msra.mxu0 0.0
    %1458 = vmatprep.subr.mxu0 0.0
    %1459 = vmatpush1.msra.mxu0 0.0
    %1460 = vmatprep.subr.mxu0 0.0
    %1461 = vmatpush1.msra.mxu0 0.0
    %1462 = vmatprep.subr.mxu0 0.0
    %1463 = vmatpush1.msra.mxu0 0.0
    %1464 = vmatprep.subr.mxu0 0.0
    %1465 = vmatpush1.msra.mxu0 0.0
    %1466 = vmatprep.subr.mxu0 0.0
    %1467 = vmatpush1.msra.mxu0 0.0
    %1468 = vmatprep.subr.mxu0 0.0
    %1469 = vmatpush1.msra.mxu0 0.0
    %1470 = vmatprep.subr.mxu0 0.0
    %1471 = vmatpush1.msra.mxu0 0.0
    %1472 = vmatprep.subr.mxu0 0.0
    %1473 = vmatpush1.msra.mxu0 0.0
    %1474 = vmatprep.subr.mxu0 0.0
    %1475 = vmatpush1.msra.mxu0 0.0
    %1476 = vmatprep.subr.mxu0 0.0
    %1477 = vmatpush1.msra.mxu0 0.0
    %1478 = vmatprep.subr.mxu0 0.0
    %1479 = vmatpush1.msra.mxu0 0.0
    %1480 = vmatprep.subr.mxu0 0.0
    %1481 = vmatpush1.msra.mxu0 0.0
    %1482 = vmatprep.subr.mxu0 0.0
    %1483 = vmatpush1.msra.mxu0 0.0
    %1484 = vmatprep.subr.mxu0 0.0
    %1485 = vmatpush1.msra.mxu0 0.0
    %1486 = vmatprep.subr.mxu0 0.0
    %1487 = vmatpush1.msra.mxu0 0.0
    %1488 = vmatprep.subr.mxu0 0.0
    %1489 = vmatpush1.msra.mxu0 0.0
    %1490 = vmatprep.subr.mxu0 0.0
    %1491 = vmatpush1.msra.mxu0 0.0
    %1492 = vmatprep.subr.mxu0 0.0
    %1493 = vmatpush1.msra.mxu0 0.0
    %1494 = vmatprep.subr.mxu0 0.0
    %1495 = vmatpush1.msra.mxu0 0.0
    %1496 = vmatprep.subr.mxu0 0.0
    %1497 = vmatpush1.msra.mxu0 0.0
    %1498 = vmatprep.subr.mxu0 0.0
    %1499 = vmatpush1.msra.mxu0 0.0
    %1500 = vmatprep.subr.mxu0 0.0
    %1501 = vmatpush1.msra.mxu0 0.0
    %1502 = vmatprep.subr.mxu0 0.0
    %1503 = vmatpush1.msra.mxu0 0.0
    %1504 = vmatprep.subr.mxu0 0.0
    %1505 = vmatpush1.msra.mxu0 0.0
    %1506 = vmatprep.subr.mxu0 0.0
    %1507 = vmatpush1.msra.mxu0 0.0
    %1508 = vmatprep.subr.mxu0 0.0
    %1509 = vmatpush1.msra.mxu0 0.0
    %1510 = vmatprep.subr.mxu0 0.0
    %1511 = vmatpush1.msra.mxu0 0.0
    %1512 = vmatprep.subr.mxu0 0.0
    %1513 = vmatpush1.msra.mxu0 0.0
    %1514 = vmatprep.subr.mxu0 0.0
    %1515 = vmatpush1.msra.mxu0 0.0
    %1516 = vmatprep.mubr.f32.mxu0 0.0
    %1517 = vmatmul.mubr.f32.gmra.mrb[0].mxu0 %v1450
    %v1518 = vpop.f32.mrb[0].mxu0
    %v1519 = vadd.f32 0.0, %v1518
    %v1520 = vpop.f32.mrb[0].mxu0
    %1521 = vdwg.mxu0
    %v1522 = vld [vmem:[%s1 + $0x68] sm:$0xff]
    %v1524 = vsel %vm375, %v1443, 0
    %v1527 = vsel %vm375, %v1519, 0
    %1529 = vmatprep.subr.mxu0 0.0
    %1530 = vmatpush1.msra.mxu0 %v1522
    %1531 = vmatprep.subr.mxu0 0.0
    %1532 = vmatpush1.msra.mxu0 0.0
    %1533 = vmatprep.subr.mxu0 0.0
    %1534 = vmatpush1.msra.mxu0 0.0
    %1535 = vmatprep.subr.mxu0 0.0
    %1536 = vmatpush1.msra.mxu0 0.0
    %1537 = vmatprep.subr.mxu0 0.0
    %1538 = vmatpush1.msra.mxu0 0.0
    %1539 = vmatprep.subr.mxu0 0.0
    %1540 = vmatpush1.msra.mxu0 0.0
    %1541 = vmatprep.subr.mxu0 0.0
    %1542 = vmatpush1.msra.mxu0 0.0
    %1543 = vmatprep.subr.mxu0 0.0
    %1544 = vmatpush1.msra.mxu0 0.0
    %1545 = vmatprep.subr.mxu0 0.0
    %1546 = vmatpush1.msra.mxu0 0.0
    %1547 = vmatprep.subr.mxu0 0.0
    %1548 = vmatpush1.msra.mxu0 0.0
    %1549 = vmatprep.subr.mxu0 0.0
    %1550 = vmatpush1.msra.mxu0 0.0
    %1551 = vmatprep.subr.mxu0 0.0
    %1552 = vmatpush1.msra.mxu0 0.0
    %1553 = vmatprep.subr.mxu0 0.0
    %1554 = vmatpush1.msra.mxu0 0.0
    %1555 = vmatprep.subr.mxu0 0.0
    %1556 = vmatpush1.msra.mxu0 0.0
    %1557 = vmatprep.subr.mxu0 0.0
    %1558 = vmatpush1.msra.mxu0 0.0
    %1559 = vmatprep.subr.mxu0 0.0
    %1560 = vmatpush1.msra.mxu0 0.0
    %1561 = vmatprep.subr.mxu0 0.0
    %1562 = vmatpush1.msra.mxu0 0.0
    %1563 = vmatprep.subr.mxu0 0.0
    %1564 = vmatpush1.msra.mxu0 0.0
    %1565 = vmatprep.subr.mxu0 0.0
    %1566 = vmatpush1.msra.mxu0 0.0
    %1567 = vmatprep.subr.mxu0 0.0
    %1568 = vmatpush1.msra.mxu0 0.0
    %1569 = vmatprep.subr.mxu0 0.0
    %1570 = vmatpush1.msra.mxu0 0.0
    %1571 = vmatprep.subr.mxu0 0.0
    %1572 = vmatpush1.msra.mxu0 0.0
    %1573 = vmatprep.subr.mxu0 0.0
    %1574 = vmatpush1.msra.mxu0 0.0
    %1575 = vmatprep.subr.mxu0 0.0
    %1576 = vmatpush1.msra.mxu0 0.0
    %1577 = vmatprep.subr.mxu0 0.0
    %1578 = vmatpush1.msra.mxu0 0.0
    %1579 = vmatprep.subr.mxu0 0.0
    %1580 = vmatpush1.msra.mxu0 0.0
    %1581 = vmatprep.subr.mxu0 0.0
    %1582 = vmatpush1.msra.mxu0 0.0
    %1583 = vmatprep.subr.mxu0 0.0
    %1584 = vmatpush1.msra.mxu0 0.0
    %1585 = vmatprep.subr.mxu0 0.0
    %1586 = vmatpush1.msra.mxu0 0.0
    %1587 = vmatprep.subr.mxu0 0.0
    %1588 = vmatpush1.msra.mxu0 0.0
    %1589 = vmatprep.subr.mxu0 0.0
    %1590 = vmatpush1.msra.mxu0 0.0
    %1591 = vmatprep.subr.mxu0 0.0
    %1592 = vmatpush1.msra.mxu0 0.0
    %1593 = vmatprep.mubr.f32.mxu0 0.0
    %1594 = vmatmul.mubr.f32.gmra.mrb[0].mxu0 %v1524
    %v1595 = vpop.f32.mrb[0].mxu0
    %v1596 = vadd.f32 0.0, %v1595
    %v1597 = vpop.f32.mrb[0].mxu0
    %1598 = vmatprep.mubr.f32.mxu0 0.0
    %1599 = vmatmul.mubr.f32.gmra.mrb[0].mxu0 %v1527
    %v1600 = vpop.f32.mrb[0].mxu0
    %v1601 = vadd.f32 0.0, %v1600
    %v1602 = vpop.f32.mrb[0].mxu0
    %1603 = vdwg.mxu0
    %v1604 = vadd.f32 %v1184, %v1596
    %v1605 = vadd.f32 %v1189, %v1601
    %1606 = vrot.lane.b32.xlu0 %v199, 104
    %v1607 = vpop.permute.xlu0 %1606
    %1608 = vrot.lane.b32.xlu0 %v280, 104
    %v1609 = vpop.permute.xlu0 %1608
    %v1610 = vsel %vm375, %v1607, 0
    %v1612 = vsel %vm375, %v1609, 0
    %1614 = vmatprep.subr.mxu0 0.0
    %1615 = vmatpush1.xpose.msra.mxu0 %v1612
    %1616 = vmatprep.subr.mxu0 0.0
    %1617 = vmatpush1.xpose.msra.mxu0 0.0
    %1618 = vmatprep.subr.mxu0 0.0
    %1619 = vmatpush1.xpose.msra.mxu0 0.0
    %1620 = vmatprep.subr.mxu0 0.0
    %1621 = vmatpush1.xpose.msra.mxu0 0.0
    %1622 = vmatprep.subr.mxu0 0.0
    %1623 = vmatpush1.xpose.msra.mxu0 0.0
    %1624 = vmatprep.subr.mxu0 0.0
    %1625 = vmatpush1.xpose.msra.mxu0 0.0
    %1626 = vmatprep.subr.mxu0 0.0
    %1627 = vmatpush1.xpose.msra.mxu0 0.0
    %1628 = vmatprep.subr.mxu0 0.0
    %1629 = vmatpush1.xpose.msra.mxu0 0.0
    %1630 = vmatprep.subr.mxu0 0.0
    %1631 = vmatpush1.xpose.msra.mxu0 0.0
    %1632 = vmatprep.subr.mxu0 0.0
    %1633 = vmatpush1.xpose.msra.mxu0 0.0
    %1634 = vmatprep.subr.mxu0 0.0
    %1635 = vmatpush1.xpose.msra.mxu0 0.0
    %1636 = vmatprep.subr.mxu0 0.0
    %1637 = vmatpush1.xpose.msra.mxu0 0.0
    %1638 = vmatprep.subr.mxu0 0.0
    %1639 = vmatpush1.xpose.msra.mxu0 0.0
    %1640 = vmatprep.subr.mxu0 0.0
    %1641 = vmatpush1.xpose.msra.mxu0 0.0
    %1642 = vmatprep.subr.mxu0 0.0
    %1643 = vmatpush1.xpose.msra.mxu0 0.0
    %1644 = vmatprep.subr.mxu0 0.0
    %1645 = vmatpush1.xpose.msra.mxu0 0.0
    %1646 = vmatprep.subr.mxu0 0.0
    %1647 = vmatpush1.xpose.msra.mxu0 0.0
    %1648 = vmatprep.subr.mxu0 0.0
    %1649 = vmatpush1.xpose.msra.mxu0 0.0
    %1650 = vmatprep.subr.mxu0 0.0
    %1651 = vmatpush1.xpose.msra.mxu0 0.0
    %1652 = vmatprep.subr.mxu0 0.0
    %1653 = vmatpush1.xpose.msra.mxu0 0.0
    %1654 = vmatprep.subr.mxu0 0.0
    %1655 = vmatpush1.xpose.msra.mxu0 0.0
    %1656 = vmatprep.subr.mxu0 0.0
    %1657 = vmatpush1.xpose.msra.mxu0 0.0
    %1658 = vmatprep.subr.mxu0 0.0
    %1659 = vmatpush1.xpose.msra.mxu0 0.0
    %1660 = vmatprep.subr.mxu0 0.0
    %1661 = vmatpush1.xpose.msra.mxu0 0.0
    %1662 = vmatprep.subr.mxu0 0.0
    %1663 = vmatpush1.xpose.msra.mxu0 0.0
    %1664 = vmatprep.subr.mxu0 0.0
    %1665 = vmatpush1.xpose.msra.mxu0 0.0
    %1666 = vmatprep.subr.mxu0 0.0
    %1667 = vmatpush1.xpose.msra.mxu0 0.0
    %1668 = vmatprep.subr.mxu0 0.0
    %1669 = vmatpush1.xpose.msra.mxu0 0.0
    %1670 = vmatprep.subr.mxu0 0.0
    %1671 = vmatpush1.xpose.msra.mxu0 0.0
    %1672 = vmatprep.subr.mxu0 0.0
    %1673 = vmatpush1.xpose.msra.mxu0 0.0
    %1674 = vmatprep.subr.mxu0 0.0
    %1675 = vmatpush1.xpose.msra.mxu0 0.0
    %1676 = vmatprep.subr.mxu0 0.0
    %1677 = vmatpush1.xpose.msra.mxu0 0.0
    %1678 = vmatprep.mubr.f32.mxu0 0.0
    %1679 = vmatmul.mubr.f32.gmra.mrb[0].mxu0 %v1610
    %v1680 = vpop.f32.mrb[0].mxu0
    %v1681 = vadd.f32 %v374, %v1680
    %v1682 = vpop.f32.mrb[0].mxu0
    %1683 = vdwg.mxu0
    %1684 = vrot.lane.b32.xlu0 %v204, 104
    %v1685 = vpop.permute.xlu0 %1684
    %1686 = vrot.lane.b32.xlu0 %v285, 104
    %v1687 = vpop.permute.xlu0 %1686
    %v1688 = vsel %vm375, %v1685, 0
    %v1690 = vsel %vm375, %v1687, 0
    %1692 = vmatprep.subr.mxu0 0.0
    %1693 = vmatpush1.xpose.msra.mxu0 %v1690
    %1694 = vmatprep.subr.mxu0 0.0
    %1695 = vmatpush1.xpose.msra.mxu0 0.0
    %1696 = vmatprep.subr.mxu0 0.0
    %1697 = vmatpush1.xpose.msra.mxu0 0.0
    %1698 = vmatprep.subr.mxu0 0.0
    %1699 = vmatpush1.xpose.msra.mxu0 0.0
    %1700 = vmatprep.subr.mxu0 0.0
    %1701 = vmatpush1.xpose.msra.mxu0 0.0
    %1702 = vmatprep.subr.mxu0 0.0
    %1703 = vmatpush1.xpose.msra.mxu0 0.0
    %1704 = vmatprep.subr.mxu0 0.0
    %1705 = vmatpush1.xpose.msra.mxu0 0.0
    %1706 = vmatprep.subr.mxu0 0.0
    %1707 = vmatpush1.xpose.msra.mxu0 0.0
    %1708 = vmatprep.subr.mxu0 0.0
    %1709 = vmatpush1.xpose.msra.mxu0 0.0
    %1710 = vmatprep.subr.mxu0 0.0
    %1711 = vmatpush1.xpose.msra.mxu0 0.0
    %1712 = vmatprep.subr.mxu0 0.0
    %1713 = vmatpush1.xpose.msra.mxu0 0.0
    %1714 = vmatprep.subr.mxu0 0.0
    %1715 = vmatpush1.xpose.msra.mxu0 0.0
    %1716 = vmatprep.subr.mxu0 0.0
    %1717 = vmatpush1.xpose.msra.mxu0 0.0
    %1718 = vmatprep.subr.mxu0 0.0
    %1719 = vmatpush1.xpose.msra.mxu0 0.0
    %1720 = vmatprep.subr.mxu0 0.0
    %1721 = vmatpush1.xpose.msra.mxu0 0.0
    %1722 = vmatprep.subr.mxu0 0.0
    %1723 = vmatpush1.xpose.msra.mxu0 0.0
    %1724 = vmatprep.subr.mxu0 0.0
    %1725 = vmatpush1.xpose.msra.mxu0 0.0
    %1726 = vmatprep.subr.mxu0 0.0
    %1727 = vmatpush1.xpose.msra.mxu0 0.0
    %1728 = vmatprep.subr.mxu0 0.0
    %1729 = vmatpush1.xpose.msra.mxu0 0.0
    %1730 = vmatprep.subr.mxu0 0.0
    %1731 = vmatpush1.xpose.msra.mxu0 0.0
    %1732 = vmatprep.subr.mxu0 0.0
    %1733 = vmatpush1.xpose.msra.mxu0 0.0
    %1734 = vmatprep.subr.mxu0 0.0
    %1735 = vmatpush1.xpose.msra.mxu0 0.0
    %1736 = vmatprep.subr.mxu0 0.0
    %1737 = vmatpush1.xpose.msra.mxu0 0.0
    %1738 = vmatprep.subr.mxu0 0.0
    %1739 = vmatpush1.xpose.msra.mxu0 0.0
    %1740 = vmatprep.subr.mxu0 0.0
    %1741 = vmatpush1.xpose.msra.mxu0 0.0
    %1742 = vmatprep.subr.mxu0 0.0
    %1743 = vmatpush1.xpose.msra.mxu0 0.0
    %1744 = vmatprep.subr.mxu0 0.0
    %1745 = vmatpush1.xpose.msra.mxu0 0.0
    %1746 = vmatprep.subr.mxu0 0.0
    %1747 = vmatpush1.xpose.msra.mxu0 0.0
    %1748 = vmatprep.subr.mxu0 0.0
    %1749 = vmatpush1.xpose.msra.mxu0 0.0
    %1750 = vmatprep.subr.mxu0 0.0
    %1751 = vmatpush1.xpose.msra.mxu0 0.0
    %1752 = vmatprep.subr.mxu0 0.0
    %1753 = vmatpush1.xpose.msra.mxu0 0.0
    %1754 = vmatprep.subr.mxu0 0.0
    %1755 = vmatpush1.xpose.msra.mxu0 0.0
    %1756 = vmatprep.mubr.f32.mxu0 0.0
    %1757 = vmatmul.mubr.f32.gmra.mrb[0].mxu0 %v1688
    %v1758 = vpop.f32.mrb[0].mxu0
    %v1759 = vadd.f32 %v374, %v1758
    %v1760 = vpop.f32.mrb[0].mxu0
    %1761 = vdwg.mxu0
    %v1762 = vsel %vm375, %v1681, -inf
    %1763 = vmax.xlane.f32.xlu0 %v1762
    %v1764 = vpop.xlane.xlu0 %1763
    %v1765 = vsel %vm375, %v1759, -inf
    %1766 = vmax.xlane.f32.xlu0 %v1765
    %v1767 = vpop.xlane.xlu0 %1766
    %v1768 = vsub.f32 %v1681, %v1764
    %v1769 = vsub.f32 %v1759, %v1767
    %v1770 = vmul.f32 %v1768, 1.442695
    %v1771 = vpow.pop %v1770
    %v1772 = vmul.f32 %v1769, 1.442695
    %v1773 = vpow.pop %v1772
    %v1774 = vsel %vm375, %v1771, 0.0
    %1775 = vadd.xlane.f32.xlu0 %v1774
    %v1776 = vpop.xlane.xlu0 %1775
    %v1777 = vsel %vm375, %v1773, 0.0
    %1778 = vadd.xlane.f32.xlu0 %v1777
    %v1779 = vpop.xlane.xlu0 %1778
    %v1780 = vrcp.pop %v1776
    %v1781 = vrcp.pop %v1779
    %v1782 = vmul.f32 %v1771, %v1780
    %v1783 = vmul.f32 %v1773, %v1781
    %1784 = vrot.lane.b32.xlu0 %v361, 104
    %v1785 = vpop.permute.xlu0 %1784
    %v1788 = vsel %vm375, %v1782, 0
    %1790 = vmatprep.subr.mxu0 0.0
    %1791 = vmatpush1.msra.mxu0 %v1785
    %1792 = vmatprep.subr.mxu0 0.0
    %1793 = vmatpush1.msra.mxu0 0.0
    %1794 = vmatprep.subr.mxu0 0.0
    %1795 = vmatpush1.msra.mxu0 0.0
    %1796 = vmatprep.subr.mxu0 0.0
    %1797 = vmatpush1.msra.mxu0 0.0
    %1798 = vmatprep.subr.mxu0 0.0
    %1799 = vmatpush1.msra.mxu0 0.0
    %1800 = vmatprep.subr.mxu0 0.0
    %1801 = vmatpush1.msra.mxu0 0.0
    %1802 = vmatprep.subr.mxu0 0.0
    %1803 = vmatpush1.msra.mxu0 0.0
    %1804 = vmatprep.subr.mxu0 0.0
    %1805 = vmatpush1.msra.mxu0 0.0
    %1806 = vmatprep.subr.mxu0 0.0
    %1807 = vmatpush1.msra.mxu0 0.0
    %1808 = vmatprep.subr.mxu0 0.0
    %1809 = vmatpush1.msra.mxu0 0.0
    %1810 = vmatprep.subr.mxu0 0.0
    %1811 = vmatpush1.msra.mxu0 0.0
    %1812 = vmatprep.subr.mxu0 0.0
    %1813 = vmatpush1.msra.mxu0 0.0
    %1814 = vmatprep.subr.mxu0 0.0
    %1815 = vmatpush1.msra.mxu0 0.0
    %1816 = vmatprep.subr.mxu0 0.0
    %1817 = vmatpush1.msra.mxu0 0.0
    %1818 = vmatprep.subr.mxu0 0.0
    %1819 = vmatpush1.msra.mxu0 0.0
    %1820 = vmatprep.subr.mxu0 0.0
    %1821 = vmatpush1.msra.mxu0 0.0
    %1822 = vmatprep.subr.mxu0 0.0
    %1823 = vmatpush1.msra.mxu0 0.0
    %1824 = vmatprep.subr.mxu0 0.0
    %1825 = vmatpush1.msra.mxu0 0.0
    %1826 = vmatprep.subr.mxu0 0.0
    %1827 = vmatpush1.msra.mxu0 0.0
    %1828 = vmatprep.subr.mxu0 0.0
    %1829 = vmatpush1.msra.mxu0 0.0
    %1830 = vmatprep.subr.mxu0 0.0
    %1831 = vmatpush1.msra.mxu0 0.0
    %1832 = vmatprep.subr.mxu0 0.0
    %1833 = vmatpush1.msra.mxu0 0.0
    %1834 = vmatprep.subr.mxu0 0.0
    %1835 = vmatpush1.msra.mxu0 0.0
    %1836 = vmatprep.subr.mxu0 0.0
    %1837 = vmatpush1.msra.mxu0 0.0
    %1838 = vmatprep.subr.mxu0 0.0
    %1839 = vmatpush1.msra.mxu0 0.0
    %1840 = vmatprep.subr.mxu0 0.0
    %1841 = vmatpush1.msra.mxu0 0.0
    %1842 = vmatprep.subr.mxu0 0.0
    %1843 = vmatpush1.msra.mxu0 0.0
    %1844 = vmatprep.subr.mxu0 0.0
    %1845 = vmatpush1.msra.mxu0 0.0
    %1846 = vmatprep.subr.mxu0 0.0
    %1847 = vmatpush1.msra.mxu0 0.0
    %1848 = vmatprep.subr.mxu0 0.0
    %1849 = vmatpush1.msra.mxu0 0.0
    %1850 = vmatprep.subr.mxu0 0.0
    %1851 = vmatpush1.msra.mxu0 0.0
    %1852 = vmatprep.subr.mxu0 0.0
    %1853 = vmatpush1.msra.mxu0 0.0
    %1854 = vmatprep.mubr.f32.mxu0 0.0
    %1855 = vmatmul.mubr.f32.gmra.mrb[0].mxu0 %v1788
    %v1856 = vpop.f32.mrb[0].mxu0
    %v1857 = vadd.f32 0.0, %v1856
    %v1858 = vpop.f32.mrb[0].mxu0
    %1859 = vdwg.mxu0
    %1860 = vrot.lane.b32.xlu0 %v366, 104
    %v1861 = vpop.permute.xlu0 %1860
    %v1864 = vsel %vm375, %v1783, 0
    %1866 = vmatprep.subr.mxu0 0.0
    %1867 = vmatpush1.msra.mxu0 %v1861
    %1868 = vmatprep.subr.mxu0 0.0
    %1869 = vmatpush1.msra.mxu0 0.0
    %1870 = vmatprep.subr.mxu0 0.0
    %1871 = vmatpush1.msra.mxu0 0.0
    %1872 = vmatprep.subr.mxu0 0.0
    %1873 = vmatpush1.msra.mxu0 0.0
    %1874 = vmatprep.subr.mxu0 0.0
    %1875 = vmatpush1.msra.mxu0 0.0
    %1876 = vmatprep.subr.mxu0 0.0
    %1877 = vmatpush1.msra.mxu0 0.0
    %1878 = vmatprep.subr.mxu0 0.0
    %1879 = vmatpush1.msra.mxu0 0.0
    %1880 = vmatprep.subr.mxu0 0.0
    %1881 = vmatpush1.msra.mxu0 0.0
    %1882 = vmatprep.subr.mxu0 0.0
    %1883 = vmatpush1.msra.mxu0 0.0
    %1884 = vmatprep.subr.mxu0 0.0
    %1885 = vmatpush1.msra.mxu0 0.0
    %1886 = vmatprep.subr.mxu0 0.0
    %1887 = vmatpush1.msra.mxu0 0.0
    %1888 = vmatprep.subr.mxu0 0.0
    %1889 = vmatpush1.msra.mxu0 0.0
    %1890 = vmatprep.subr.mxu0 0.0
    %1891 = vmatpush1.msra.mxu0 0.0
    %1892 = vmatprep.subr.mxu0 0.0
    %1893 = vmatpush1.msra.mxu0 0.0
    %1894 = vmatprep.subr.mxu0 0.0
    %1895 = vmatpush1.msra.mxu0 0.0
    %1896 = vmatprep.subr.mxu0 0.0
    %1897 = vmatpush1.msra.mxu0 0.0
    %1898 = vmatprep.subr.mxu0 0.0
    %1899 = vmatpush1.msra.mxu0 0.0
    %1900 = vmatprep.subr.mxu0 0.0
    %1901 = vmatpush1.msra.mxu0 0.0
    %1902 = vmatprep.subr.mxu0 0.0
    %1903 = vmatpush1.msra.mxu0 0.0
    %1904 = vmatprep.subr.mxu0 0.0
    %1905 = vmatpush1.msra.mxu0 0.0
    %1906 = vmatprep.subr.mxu0 0.0
    %1907 = vmatpush1.msra.mxu0 0.0
    %1908 = vmatprep.subr.mxu0 0.0
    %1909 = vmatpush1.msra.mxu0 0.0
    %1910 = vmatprep.subr.mxu0 0.0
    %1911 = vmatpush1.msra.mxu0 0.0
    %1912 = vmatprep.subr.mxu0 0.0
    %1913 = vmatpush1.msra.mxu0 0.0
    %1914 = vmatprep.subr.mxu0 0.0
    %1915 = vmatpush1.msra.mxu0 0.0
    %1916 = vmatprep.subr.mxu0 0.0
    %1917 = vmatpush1.msra.mxu0 0.0
    %1918 = vmatprep.subr.mxu0 0.0
    %1919 = vmatpush1.msra.mxu0 0.0
    %1920 = vmatprep.subr.mxu0 0.0
    %1921 = vmatpush1.msra.mxu0 0.0
    %1922 = vmatprep.subr.mxu0 0.0
    %1923 = vmatpush1.msra.mxu0 0.0
    %1924 = vmatprep.subr.mxu0 0.0
    %1925 = vmatpush1.msra.mxu0 0.0
    %1926 = vmatprep.subr.mxu0 0.0
    %1927 = vmatpush1.msra.mxu0 0.0
    %1928 = vmatprep.subr.mxu0 0.0
    %1929 = vmatpush1.msra.mxu0 0.0
    %1930 = vmatprep.mubr.f32.mxu0 0.0
    %1931 = vmatmul.mubr.f32.gmra.mrb[0].mxu0 %v1864
    %v1932 = vpop.f32.mrb[0].mxu0
    %v1933 = vadd.f32 0.0, %v1932
    %v1934 = vpop.f32.mrb[0].mxu0
    %1935 = vdwg.mxu0
    %v1936 = vld [vmem:[%s1 + $0x90] sm:$0xff]
    %v1938 = vsel %vm375, %v1857, 0
    %v1941 = vsel %vm375, %v1933, 0
    %1943 = vmatprep.subr.mxu0 0.0
    %1944 = vmatpush1.msra.mxu0 %v1936
    %1945 = vmatprep.subr.mxu0 0.0
    %1946 = vmatpush1.msra.mxu0 0.0
    %1947 = vmatprep.subr.mxu0 0.0
    %1948 = vmatpush1.msra.mxu0 0.0
    %1949 = vmatprep.subr.mxu0 0.0
    %1950 = vmatpush1.msra.mxu0 0.0
    %1951 = vmatprep.subr.mxu0 0.0
    %1952 = vmatpush1.msra.mxu0 0.0
    %1953 = vmatprep.subr.mxu0 0.0
    %1954 = vmatpush1.msra.mxu0 0.0
    %1955 = vmatprep.subr.mxu0 0.0
    %1956 = vmatpush1.msra.mxu0 0.0
    %1957 = vmatprep.subr.mxu0 0.0
    %1958 = vmatpush1.msra.mxu0 0.0
    %1959 = vmatprep.subr.mxu0 0.0
    %1960 = vmatpush1.msra.mxu0 0.0
    %1961 = vmatprep.subr.mxu0 0.0
    %1962 = vmatpush1.msra.mxu0 0.0
    %1963 = vmatprep.subr.mxu0 0.0
    %1964 = vmatpush1.msra.mxu0 0.0
    %1965 = vmatprep.subr.mxu0 0.0
    %1966 = vmatpush1.msra.mxu0 0.0
    %1967 = vmatprep.subr.mxu0 0.0
    %1968 = vmatpush1.msra.mxu0 0.0
    %1969 = vmatprep.subr.mxu0 0.0
    %1970 = vmatpush1.msra.mxu0 0.0
    %1971 = vmatprep.subr.mxu0 0.0
    %1972 = vmatpush1.msra.mxu0 0.0
    %1973 = vmatprep.subr.mxu0 0.0
    %1974 = vmatpush1.msra.mxu0 0.0
    %1975 = vmatprep.subr.mxu0 0.0
    %1976 = vmatpush1.msra.mxu0 0.0
    %1977 = vmatprep.subr.mxu0 0.0
    %1978 = vmatpush1.msra.mxu0 0.0
    %1979 = vmatprep.subr.mxu0 0.0
    %1980 = vmatpush1.msra.mxu0 0.0
    %1981 = vmatprep.subr.mxu0 0.0
    %1982 = vmatpush1.msra.mxu0 0.0
    %1983 = vmatprep.subr.mxu0 0.0
    %1984 = vmatpush1.msra.mxu0 0.0
    %1985 = vmatprep.subr.mxu0 0.0
    %1986 = vmatpush1.msra.mxu0 0.0
    %1987 = vmatprep.subr.mxu0 0.0
    %1988 = vmatpush1.msra.mxu0 0.0
    %1989 = vmatprep.subr.mxu0 0.0
    %1990 = vmatpush1.msra.mxu0 0.0
    %1991 = vmatprep.subr.mxu0 0.0
    %1992 = vmatpush1.msra.mxu0 0.0
    %1993 = vmatprep.subr.mxu0 0.0
    %1994 = vmatpush1.msra.mxu0 0.0
    %1995 = vmatprep.subr.mxu0 0.0
    %1996 = vmatpush1.msra.mxu0 0.0
    %1997 = vmatprep.subr.mxu0 0.0
    %1998 = vmatpush1.msra.mxu0 0.0
    %1999 = vmatprep.subr.mxu0 0.0
    %2000 = vmatpush1.msra.mxu0 0.0
    %2001 = vmatprep.subr.mxu0 0.0
    %2002 = vmatpush1.msra.mxu0 0.0
    %2003 = vmatprep.subr.mxu0 0.0
    %2004 = vmatpush1.msra.mxu0 0.0
    %2005 = vmatprep.subr.mxu0 0.0
    %2006 = vmatpush1.msra.mxu0 0.0
    %2007 = vmatprep.mubr.f32.mxu0 0.0
    %2008 = vmatmul.mubr.f32.gmra.mrb[0].mxu0 %v1938
    %v2009 = vpop.f32.mrb[0].mxu0
    %v2010 = vadd.f32 0.0, %v2009
    %v2011 = vpop.f32.mrb[0].mxu0
    %2012 = vmatprep.mubr.f32.mxu0 0.0
    %2013 = vmatmul.mubr.f32.gmra.mrb[0].mxu0 %v1941
    %v2014 = vpop.f32.mrb[0].mxu0
    %v2015 = vadd.f32 0.0, %v2014
    %v2016 = vpop.f32.mrb[0].mxu0
    %2017 = vdwg.mxu0
    %v2018 = vadd.f32 %v1604, %v2010
    %v2019 = vadd.f32 %v1605, %v2015
    %v2021 = vlaneseq
    %v2022 = vshrl.u32 %v2021, 7
    %v2023 = vsub.s32 0, %v2022
    %v2024 = vrot.slane %v71, %v2023
    %v2026 = vadd.f32 %v2018, %v2024
    %v2027 = vadd.f32 %v2019, %v2024
    %v2028 = vadd.f32 %v2026, %v32
    %v2029 = vadd.f32 %v2027, %v33
    %v2030 = vsel %vm76, %v2028, 0.0
    %2031 = vadd.xlane.f32.xlu0 %v2030
    %v2032 = vpop.xlane.xlu0 %2031
    %v2033 = vsel %vm76, %v2029, 0.0
    %2034 = vadd.xlane.f32.xlu0 %v2033
    %v2035 = vpop.xlane.xlu0 %2034
    %v2036 = vmul.f32 %v2032, %v83
    %v2037 = vmul.f32 %v2035, %v83
    %v2038 = vsub.f32 %v2028, %v2036
    %v2039 = vsub.f32 %v2029, %v2037
    %v2040 = vmul.f32 %v2038, %v2038
    %v2041 = vmul.f32 %v2039, %v2039
    %v2042 = vsel %vm76, %v2040, 0.0
    %2043 = vadd.xlane.f32.xlu0 %v2042
    %v2044 = vpop.xlane.xlu0 %2043
    %v2045 = vsel %vm76, %v2041, 0.0
    %2046 = vadd.xlane.f32.xlu0 %v2045
    %v2047 = vpop.xlane.xlu0 %2046
    %v2048 = vmul.f32 %v2044, %v83
    %v2049 = vmul.f32 %v2047, %v83
    %v2050 = vadd.f32 %v2048, 1e-05
    %v2051 = vadd.f32 %v2049, 1e-05
    %v2052 = vrsqrt.pop %v2050
    %v2053 = vrsqrt.pop %v2051
    %v2054 = vmul.f32 %v2038, %v2052
    %v2055 = vmul.f32 %v2039, %v2053
    %v2057 = vlaneseq
    %v2058 = vshrl.u32 %v2057, 7
    %v2059 = vsub.s32 0, %v2058
    %v2060 = vrot.slane %v72, %v2059
    %v2062 = vmul.f32 %v2054, %v2060
    %v2063 = vmul.f32 %v2055, %v2060
    %v2065 = vlaneseq
    %v2066 = vshrl.u32 %v2065, 7
    %v2067 = vsub.s32 0, %v2066
    %v2068 = vrot.slane %v73, %v2067
    %v2070 = vadd.f32 %v2062, %v2068
    %v2071 = vadd.f32 %v2063, %v2068
    %v2073 = vlaneseq
    %v2074 = vshrl.u32 %v2073, 7
    %v2075 = vsub.s32 0, %v2074
    %v2076 = vrot.slane %v74, %v2075
    %v2079 = vsel %vm76, %v2070, 0
    %v2082 = vsel %vm76, %v2071, 0
    %2084 = vmatprep.subr.mxu0 0.0
    %2085 = vmatpush1.msra.mxu0 %v46
    %2086 = vmatprep.subr.mxu0 0.0
    %2087 = vmatpush1.msra.mxu0 %v47
    %2088 = vmatprep.subr.mxu0 0.0
    %2089 = vmatpush1.msra.mxu0 %v48
    %2090 = vmatprep.subr.mxu0 0.0
    %2091 = vmatpush1.msra.mxu0 %v49
    %2092 = vmatprep.subr.mxu0 0.0
    %2093 = vmatpush1.msra.mxu0 0.0
    %2094 = vmatprep.subr.mxu0 0.0
    %2095 = vmatpush1.msra.mxu0 0.0
    %2096 = vmatprep.subr.mxu0 0.0
    %2097 = vmatpush1.msra.mxu0 0.0
    %2098 = vmatprep.subr.mxu0 0.0
    %2099 = vmatpush1.msra.mxu0 0.0
    %2100 = vmatprep.subr.mxu0 0.0
    %2101 = vmatpush1.msra.mxu0 0.0
    %2102 = vmatprep.subr.mxu0 0.0
    %2103 = vmatpush1.msra.mxu0 0.0
    %2104 = vmatprep.subr.mxu0 0.0
    %2105 = vmatpush1.msra.mxu0 0.0
    %2106 = vmatprep.subr.mxu0 0.0
    %2107 = vmatpush1.msra.mxu0 0.0
    %2108 = vmatprep.subr.mxu0 0.0
    %2109 = vmatpush1.msra.mxu0 0.0
    %2110 = vmatprep.subr.mxu0 0.0
    %2111 = vmatpush1.msra.mxu0 0.0
    %2112 = vmatprep.subr.mxu0 0.0
    %2113 = vmatpush1.msra.mxu0 0.0
    %2114 = vmatprep.subr.mxu0 0.0
    %2115 = vmatpush1.msra.mxu0 0.0
    %2116 = vmatprep.subr.mxu0 0.0
    %2117 = vmatpush1.msra.mxu0 0.0
    %2118 = vmatprep.subr.mxu0 0.0
    %2119 = vmatpush1.msra.mxu0 0.0
    %2120 = vmatprep.subr.mxu0 0.0
    %2121 = vmatpush1.msra.mxu0 0.0
    %2122 = vmatprep.subr.mxu0 0.0
    %2123 = vmatpush1.msra.mxu0 0.0
    %2124 = vmatprep.subr.mxu0 0.0
    %2125 = vmatpush1.msra.mxu0 0.0
    %2126 = vmatprep.subr.mxu0 0.0
    %2127 = vmatpush1.msra.mxu0 0.0
    %2128 = vmatprep.subr.mxu0 0.0
    %2129 = vmatpush1.msra.mxu0 0.0
    %2130 = vmatprep.subr.mxu0 0.0
    %2131 = vmatpush1.msra.mxu0 0.0
    %2132 = vmatprep.subr.mxu0 0.0
    %2133 = vmatpush1.msra.mxu0 0.0
    %2134 = vmatprep.subr.mxu0 0.0
    %2135 = vmatpush1.msra.mxu0 0.0
    %2136 = vmatprep.subr.mxu0 0.0
    %2137 = vmatpush1.msra.mxu0 0.0
    %2138 = vmatprep.subr.mxu0 0.0
    %2139 = vmatpush1.msra.mxu0 0.0
    %2140 = vmatprep.subr.mxu0 0.0
    %2141 = vmatpush1.msra.mxu0 0.0
    %2142 = vmatprep.subr.mxu0 0.0
    %2143 = vmatpush1.msra.mxu0 0.0
    %2144 = vmatprep.subr.mxu0 0.0
    %2145 = vmatpush1.msra.mxu0 0.0
    %2146 = vmatprep.subr.mxu0 0.0
    %2147 = vmatpush1.msra.mxu0 0.0
    %2148 = vmatprep.mubr.f32.mxu0 0.0
    %2149 = vmatmul.mubr.f32.gmra.mrb[0].mxu0 %v2079
    %v2150 = vpop.f32.mrb[0].mxu0
    %v2151 = vadd.f32 %v2076, %v2150
    %v2152 = vpop.f32.mrb[0].mxu0
    %2153 = vmatprep.mubr.f32.mxu0 0.0
    %2154 = vmatmul.mubr.f32.gmra.mrb[0].mxu0 %v2082
    %v2155 = vpop.f32.mrb[0].mxu0
    %v2156 = vadd.f32 %v2076, %v2155
    %v2157 = vpop.f32.mrb[0].mxu0
    %2158 = vdwg.mxu0
    %v2159 = vmul.f32 %v2151, 1.702
    %v2160 = vmul.f32 %v2156, 1.702
    %v2161 = vxor.u32 %v2159, 2147483648
    %v2162 = vxor.u32 %v2160, 2147483648
    %v2163 = vmul.f32 %v2161, 1.442695
    %v2164 = vpow.pop %v2163
    %v2165 = vmul.f32 %v2162, 1.442695
    %v2166 = vpow.pop %v2165
    %v2167 = vadd.f32 %v2164, 1.0
    %v2168 = vadd.f32 %v2166, 1.0
    %v2169 = vrcp.pop %v2167
    %v2170 = vmul.f32 1.0, %v2169
    %v2171 = vrcp.pop %v2168
    %v2172 = vmul.f32 1.0, %v2171
    %v2173 = vmul.f32 %v2151, %v2170
    %v2174 = vmul.f32 %v2156, %v2172
    %v2176 = vlaneseq
    %v2177 = vshrl.u32 %v2176, 7
    %v2178 = vsub.s32 0, %v2177
    %v2179 = vrot.slane %v75, %v2178
    %2181 = vmatprep.subr.mxu0 0.0
    %2182 = vmatpush1.msra.mxu0 %v50
    %2183 = vmatprep.subr.mxu0 0.0
    %2184 = vmatpush1.msra.mxu0 %v51
    %2185 = vmatprep.subr.mxu0 0.0
    %2186 = vmatpush1.msra.mxu0 %v52
    %2187 = vmatprep.subr.mxu0 0.0
    %2188 = vmatpush1.msra.mxu0 %v53
    %2189 = vmatprep.subr.mxu0 0.0
    %2190 = vmatpush1.msra.mxu0 %v54
    %2191 = vmatprep.subr.mxu0 0.0
    %2192 = vmatpush1.msra.mxu0 %v55
    %2193 = vmatprep.subr.mxu0 0.0
    %2194 = vmatpush1.msra.mxu0 %v56
    %2195 = vmatprep.subr.mxu0 0.0
    %2196 = vmatpush1.msra.mxu0 %v57
    %2197 = vmatprep.subr.mxu0 0.0
    %2198 = vmatpush1.msra.mxu0 %v58
    %2199 = vmatprep.subr.mxu0 0.0
    %2200 = vmatpush1.msra.mxu0 %v59
    %2201 = vmatprep.subr.mxu0 0.0
    %2202 = vmatpush1.msra.mxu0 %v60
    %2203 = vmatprep.subr.mxu0 0.0
    %2204 = vmatpush1.msra.mxu0 %v61
    %2205 = vmatprep.subr.mxu0 0.0
    %2206 = vmatpush1.msra.mxu0 %v62
    %2207 = vmatprep.subr.mxu0 0.0
    %2208 = vmatpush1.msra.mxu0 %v63
    %2209 = vmatprep.subr.mxu0 0.0
    %2210 = vmatpush1.msra.mxu0 %v64
    %2211 = vmatprep.subr.mxu0 0.0
    %2212 = vmatpush1.msra.mxu0 %v65
    %2213 = vmatprep.subr.mxu0 0.0
    %2214 = vmatpush1.msra.mxu0 0.0
    %2215 = vmatprep.subr.mxu0 0.0
    %2216 = vmatpush1.msra.mxu0 0.0
    %2217 = vmatprep.subr.mxu0 0.0
    %2218 = vmatpush1.msra.mxu0 0.0
    %2219 = vmatprep.subr.mxu0 0.0
    %2220 = vmatpush1.msra.mxu0 0.0
    %2221 = vmatprep.subr.mxu0 0.0
    %2222 = vmatpush1.msra.mxu0 0.0
    %2223 = vmatprep.subr.mxu0 0.0
    %2224 = vmatpush1.msra.mxu0 0.0
    %2225 = vmatprep.subr.mxu0 0.0
    %2226 = vmatpush1.msra.mxu0 0.0
    %2227 = vmatprep.subr.mxu0 0.0
    %2228 = vmatpush1.msra.mxu0 0.0
    %2229 = vmatprep.subr.mxu0 0.0
    %2230 = vmatpush1.msra.mxu0 0.0
    %2231 = vmatprep.subr.mxu0 0.0
    %2232 = vmatpush1.msra.mxu0 0.0
    %2233 = vmatprep.subr.mxu0 0.0
    %2234 = vmatpush1.msra.mxu0 0.0
    %2235 = vmatprep.subr.mxu0 0.0
    %2236 = vmatpush1.msra.mxu0 0.0
    %2237 = vmatprep.subr.mxu0 0.0
    %2238 = vmatpush1.msra.mxu0 0.0
    %2239 = vmatprep.subr.mxu0 0.0
    %2240 = vmatpush1.msra.mxu0 0.0
    %2241 = vmatprep.subr.mxu0 0.0
    %2242 = vmatpush1.msra.mxu0 0.0
    %2243 = vmatprep.subr.mxu0 0.0
    %2244 = vmatpush1.msra.mxu0 0.0
    %2245 = vmatprep.mubr.f32.mxu0 0.0
    %2246 = vmatmul.mubr.f32.gmra.mrb[0].mxu0 %v2173
    %v2247 = vpop.f32.mrb[0].mxu0
    %v2248 = vadd.f32 %v2179, %v2247
    %v2249 = vpop.f32.mrb[0].mxu0
    %2250 = vmatprep.mubr.f32.mxu0 0.0
    %2251 = vmatmul.mubr.f32.gmra.mrb[0].mxu0 %v2174
    %v2252 = vpop.f32.mrb[0].mxu0
    %v2253 = vadd.f32 %v2179, %v2252
    %v2254 = vpop.f32.mrb[0].mxu0
    %2255 = vdwg.mxu0
    %v2256 = vadd.f32 %v2248, %v2028
    %v2257 = vadd.f32 %v2253, %v2029
    %2258 = vst.msk [vmem:[#allocation5] sm:$0xff] %vm76, %v2256
    %2259 = vst.msk [vmem:[#allocation5 + $0x8] sm:$0xff] %vm76, %v2257
    // Predicated region
    $region22: #{clip_layer.1} parent=1 // pred_check
      _
    $region23: #{clip_layer.1} parent=1 // pred_check_branch
      %2261 = sbr.rel (0) target = $region25
    $region24: #{clip_layer.1} parent=1 // pred_region
      %s2263 = ssub.s32 256, 256
      %2264 = vsyncadd [#allocation4], %s2263
      %s2265 = sshll.u32 [#allocation5], 4
      %s2266 = int_to_ptr.vmem [resolvable:$true] %s2265
      %2271 = dma.vmem_to_hbm [thread:$0]  %s2266, 256, %s4, [#allocation4], 128, 128, 8
    $region25: #{clip_layer.1} parent=1 // pred_fallthru
      _
    // Predicated region
    $region26: #{clip_layer.1} parent=1 // pred_check
      _
    $region27: #{clip_layer.1} parent=1 // pred_check_branch
      %2273 = sbr.rel (0) target = $region29
    $region28: #{clip_layer.1} parent=1 // pred_region
      %2274 = dma.done [#allocation4], 256
    $region29: #{clip_layer.1} parent=1 // pred_fallthru
      _
    %2275 = vsyncpa [#allocation3], 1
    %2276 = vsyncpa [#allocation4], 1

</llo_original>
